<compile_context>
chip_gen: v7x
topology: tpu7x:2x2x1
jax: 0.10.0
libtpu: 0.0.40
codegen_flags: <defaults>
</compile_context>

<pallas_src>
import math

import numpy as np

import jax
import jax.numpy as jnp
from jax.experimental import pallas as pl
from jax.experimental.pallas import tpu as pltpu

_HALF_LOG_2PI = 0.5 * math.log(2.0 * math.pi)
_LEAKY_SLOPE = 0.01  # PyTorch nn.LeakyReLU() default


# ----------------------------------------------------------------------------
# Parameter init (deterministic synthetic weights; HWIO conv layout)
# ----------------------------------------------------------------------------
def init_params(key, n_in_ch, n_latent_ch, latent_embed_dims, k=3):
    keys = jax.random.split(key, 10)

    def conv(ki, kb, cin, cout):
        w = jax.random.normal(ki, (k, k, cin, cout), jnp.float32) * 0.1
        b = jax.random.normal(kb, (cout,), jnp.float32) * 0.1
        return w, b

    w1, b1 = conv(keys[0], keys[1], n_in_ch + 1, n_latent_ch)
    w2, b2 = conv(keys[2], keys[3], n_latent_ch, n_latent_ch * 2)
    w3, b3 = conv(keys[4], keys[5], n_latent_ch * 2, n_latent_ch * 4)
    wm, bm = conv(keys[6], keys[7], n_latent_ch * 4, latent_embed_dims)
    ws, bs = conv(keys[8], keys[9], n_latent_ch * 4, latent_embed_dims)
    return dict(w1=w1, b1=b1, w2=w2, b2=b2, w3=w3, b3=b3,
                wm=wm, bm=bm, ws=ws, bs=bs)


# ----------------------------------------------------------------------------
# Conv -> (row-select, lane-mix) matmul operands (precomputed once per model)
#
#   R_kh[i, h]                = 1  iff  h == stride*i + kh - pad        (0/1)
#   M_kh[w*Cin+ci, j*Cout+co] = W[kh, w - stride*j + pad, ci, co]  (valid tap)
# Out-of-range taps (the zero padding) simply get no entry -> exact.
# ----------------------------------------------------------------------------
def _selection_matrices(h_in, w_in, k, stride, pad):
    oh = (h_in + 2 * pad - k) // stride + 1
    ow = (w_in + 2 * pad - k) // stride + 1
    rows = np.zeros((k, oh, h_in), np.float32)
    for kh in range(k):
        for i in range(oh):
            h = stride * i + kh - pad
            if 0 <= h < h_in:
                rows[kh, i, h] = 1.0
    sel = np.zeros((w_in, k, ow), np.float32)
    for kw in range(k):
        for j in range(ow):
            w = stride * j + kw - pad
            if 0 <= w < w_in:
                sel[w, kw, j] = 1.0
    return rows, sel, oh, ow


def pack_params(params, img_dim=28, compute_dtype=jnp.bfloat16):
    # Qa_xMyM.__get_conv_hyperparams: img_dim == 28 -> w_sz = 3, stride = 2
    assert img_dim == 28, "packing specialized for img_dim == 28 (w_sz=3, s=2)"
    k, stride = 3, 2
    packed = {}

    def pack(idx, w_hwio, bias, h_in, w_in, pad):
        cin, cout = w_hwio.shape[2], w_hwio.shape[3]
        rows, sel, oh, ow = _selection_matrices(h_in, w_in, k, stride, pad)
        m = jnp.einsum("wkj,hkcd->hwcjd", jnp.asarray(sel), w_hwio)
        m = m.reshape(k, w_in * cin, ow * cout)
        packed[f"R{idx}"] = jnp.asarray(rows, compute_dtype)
        packed[f"M{idx}"] = m.astype(compute_dtype)
        packed[f"bias{idx}"] = (
            jnp.tile(bias, ow).reshape(1, ow * cout).astype(jnp.float32))
        return oh, ow

    h = w = img_dim
    h, w = pack(0, params["w1"], params["b1"], h, w, 1)   # 28 -> 14
    h, w = pack(1, params["w2"], params["b2"], h, w, 1)   # 14 -> 7
    h, w = pack(2, params["w3"], params["b3"], h, w, 1)   # 7  -> 4
    # merged mean / log_scale head (one MXU pass, 2L output lanes)
    w_head = jnp.concatenate([params["wm"], params["ws"]], axis=-1)
    b_head = jnp.concatenate([params["bm"], params["bs"]], axis=0)
    pack(3, w_head, b_head, h, w, 0)                      # 4  -> 1
    return packed


# ----------------------------------------------------------------------------
# Fused Pallas kernel: full forward pass for one batch element per grid step
# ----------------------------------------------------------------------------
def _fused_kernel(x_ref,
                  r1, m1, b1, r2, m2, b2, r3, m3, b3, r4, m4, b4,
                  eps_ref, a_ref, lp_ref):
    def conv(act, r_ref, m_ref, bias_ref, leaky):
        act16 = act.astype(jnp.bfloat16)
        out = None
        for kh in range(r_ref.shape[0]):              # k = 3, unrolled
            rows = jnp.dot(r_ref[kh], act16,
                           preferred_element_type=jnp.float32)
            part = jnp.dot(rows.astype(jnp.bfloat16), m_ref[kh],
                           preferred_element_type=jnp.float32)
            out = part if out is None else out + part
        out = out + bias_ref[...]
        if leaky:
            out = jnp.where(out >= 0.0, out, out * _LEAKY_SLOPE)
        return out

    act = x_ref[0]                                    # [28, 28*C0]
    act = conv(act, r1, m1, b1, True)                 # [14, 14*C1]
    act = conv(act, r2, m2, b2, True)                 # [7,  7*C2]
    act = conv(act, r3, m3, b3, False)                # [4,  4*C3]
    head = conv(act, r4, m4, b4, False)               # [1, 2L]

    latent = a_ref.shape[-1]
    mean = head[:, :latent]
    log_scale = head[:, latent:]
    # numerically-stable softplus
    softplus = jnp.maximum(log_scale, 0.0) + jnp.log(
        1.0 + jnp.exp(-jnp.abs(log_scale)))
    scale = softplus + 1e-5

    e = eps_ref[0]                                    # [1, L]
    a_ref[0] = mean + scale * e                       # rsample
    # Normal log-prob at mean + scale*eps, summed over the event dim
    lp = -0.5 * e * e - jnp.log(scale) - _HALF_LOG_2PI
    lp_ref[0] = jnp.sum(lp, axis=-1, keepdims=True)


# ----------------------------------------------------------------------------
# Forward wrapper (Qa_xMyM.forward equivalent)
# ----------------------------------------------------------------------------
@jax.jit
def qa_xmym_forward(packed, yM, xM, eps):
    b_sz, _, d, _ = yM.shape
    latent = eps.shape[-1]

    x = jnp.concatenate([xM, yM], axis=1)             # [B, C0, D, D] (NCHW)
    x = jnp.transpose(x, (0, 2, 3, 1))                # NHWC
    c0 = x.shape[-1]
    x = x.reshape(b_sz, d, d * c0)                    # [B, H, W*C0]
    eps3 = eps.reshape(b_sz, 1, latent)

    args = [x]
    in_specs = [pl.BlockSpec((1, d, d * c0), lambda b: (b, 0, 0))]
    flops = 0
    for l in range(4):
        r, m, bias = packed[f"R{l}"], packed[f"M{l}"], packed[f"bias{l}"]
        args += [r, m, bias]
        in_specs += [
            pl.BlockSpec(r.shape, lambda b: (0, 0, 0)),
            pl.BlockSpec(m.shape, lambda b: (0, 0, 0)),
            pl.BlockSpec(bias.shape, lambda b: (0, 0)),
        ]
        _, oh, h_in = r.shape
        _, kk, nn = m.shape
        flops += 3 * 2 * oh * (h_in * kk + kk * nn)
    args.append(eps3)
    in_specs.append(pl.BlockSpec((1, 1, latent), lambda b: (b, 0, 0)))

    bytes_accessed = sum(int(t.size) * t.dtype.itemsize for t in args)
    bytes_accessed += b_sz * (latent + 1) * 4
    cost = pl.CostEstimate(flops=b_sz * flops,
                           transcendentals=4 * b_sz * latent,
                           bytes_accessed=bytes_accessed)

    a, lp = pl.pallas_call(
        _fused_kernel,
        out_shape=(jax.ShapeDtypeStruct((b_sz, 1, latent), jnp.float32),
                   jax.ShapeDtypeStruct((b_sz, 1, 1), jnp.float32)),
        grid=(b_sz,),
        in_specs=in_specs,
        out_specs=(pl.BlockSpec((1, 1, latent), lambda b: (b, 0, 0)),
                   pl.BlockSpec((1, 1, 1), lambda b: (b, 0, 0))),
        compiler_params=pltpu.CompilerParams(
            dimension_semantics=("parallel",)),
        cost_estimate=cost,
    )(*args)
    return a[:, 0, :], lp[:, 0, 0]


# ----------------------------------------------------------------------------
# Plain-JAX f32 reference (for a loose numerical sanity check)
# ----------------------------------------------------------------------------
def reference_forward(params, yM, xM, eps):
    x = jnp.transpose(jnp.concatenate([xM, yM], axis=1), (0, 2, 3, 1))

    def conv(h, w, b, pad):
        y = jax.lax.conv_general_dilated(
            h, w, window_strides=(2, 2),
            padding=((pad, pad), (pad, pad)),
            dimension_numbers=("NHWC", "HWIO", "NHWC"))
        return y + b

    h = jax.nn.leaky_relu(conv(x, params["w1"], params["b1"], 1), 0.01)
    h = jax.nn.leaky_relu(conv(h, params["w2"], params["b2"], 1), 0.01)
    h = conv(h, params["w3"], params["b3"], 1)
    mean = conv(h, params["wm"], params["bm"], 0)[:, 0, 0, :]
    log_scale = conv(h, params["ws"], params["bs"], 0)[:, 0, 0, :]
    scale = jax.nn.softplus(log_scale) + 1e-5
    a = mean + scale * eps
    lp = jnp.sum(-0.5 * eps * eps - jnp.log(scale) - _HALF_LOG_2PI, axis=-1)
    return a, lp


if __name__ == "__main__":
    key = jax.random.PRNGKey(0)
    k_param, k_y, k_x, k_eps = jax.random.split(key, 4)

    B, n_in_ch, n_latent_ch, latent_embed_dims, img_dim = 2, 3, 4, 8, 28
    params = init_params(k_param, n_in_ch, n_latent_ch, latent_embed_dims)
    packed = pack_params(params, img_dim)

    yM = jax.random.normal(k_y, (B, n_in_ch, img_dim, img_dim), jnp.float32)
    xM = jax.random.uniform(k_x, (B, 1, img_dim, img_dim), jnp.float32)
    # TODO(synk): rsample's standard-normal draw is supplied as an explicit
    # eps input; it could be generated in-kernel via pltpu.prng_seed/prng_random_bits.
    eps = jax.random.normal(k_eps, (B, latent_embed_dims), jnp.float32)

    a, log_prob = qa_xmym_forward(packed, yM, xM, eps)
    jax.block_until_ready((a, log_prob))

    assert a.shape == (B, latent_embed_dims), a.shape
    assert log_prob.shape == (B,), log_prob.shape
    assert bool(jnp.all(jnp.isfinite(a))) and bool(jnp.all(jnp.isfinite(log_prob)))

    # Loose-tolerance sanity check vs. f32 reference (kernel uses bf16 MXU
    # operands with f32 accumulation).
    a_ref, lp_ref = reference_forward(params, yM, xM, eps)
    assert np.allclose(np.asarray(a), np.asarray(a_ref), rtol=0.1, atol=0.3)
    assert np.allclose(np.asarray(log_prob), np.asarray(lp_ref), rtol=0.1, atol=0.75)

    print("KERNEL_OK")
</pallas_src>

<mosaic_0001>
module attributes {stable_mosaic.version = 11 : i64} {
  func.func @_fused_kernel(%arg0: i32, %arg1: memref<1x28x112xf32, #tpu.memory_space<vmem>>, %arg2: memref<3x14x28xbf16, #tpu.memory_space<vmem>>, %arg3: memref<3x112x56xbf16, #tpu.memory_space<vmem>>, %arg4: memref<1x56xf32, #tpu.memory_space<vmem>>, %arg5: memref<3x7x14xbf16, #tpu.memory_space<vmem>>, %arg6: memref<3x56x56xbf16, #tpu.memory_space<vmem>>, %arg7: memref<1x56xf32, #tpu.memory_space<vmem>>, %arg8: memref<3x4x7xbf16, #tpu.memory_space<vmem>>, %arg9: memref<3x56x64xbf16, #tpu.memory_space<vmem>>, %arg10: memref<1x64xf32, #tpu.memory_space<vmem>>, %arg11: memref<3x1x4xbf16, #tpu.memory_space<vmem>>, %arg12: memref<3x64x16xbf16, #tpu.memory_space<vmem>>, %arg13: memref<1x16xf32, #tpu.memory_space<vmem>>, %arg14: memref<1x1x8xf32, #tpu.memory_space<vmem>>, %arg15: memref<1x1x8xf32, #tpu.memory_space<vmem>>, %arg16: memref<1x1x1xf32, #tpu.memory_space<vmem>>) attributes {dimension_semantics = [#tpu.dimension_semantics<parallel>], iteration_bounds = array<i64: 2>, scalar_prefetch = 0 : i64, scratch_operands = 0 : i64, tpu.core_type = #tpu.core_type<tc>, window_params = [{transform_indices = @transform_0, window_bounds = array<i64: 1, 28, 112>}, {pipeline_mode = #tpu.pipeline_mode<synchronous>, transform_indices = @transform_1, window_bounds = array<i64: 3, 14, 28>}, {pipeline_mode = #tpu.pipeline_mode<synchronous>, transform_indices = @transform_2, window_bounds = array<i64: 3, 112, 56>}, {pipeline_mode = #tpu.pipeline_mode<synchronous>, transform_indices = @transform_3, window_bounds = array<i64: 1, 56>}, {pipeline_mode = #tpu.pipeline_mode<synchronous>, transform_indices = @transform_4, window_bounds = array<i64: 3, 7, 14>}, {pipeline_mode = #tpu.pipeline_mode<synchronous>, transform_indices = @transform_5, window_bounds = array<i64: 3, 56, 56>}, {pipeline_mode = #tpu.pipeline_mode<synchronous>, transform_indices = @transform_6, window_bounds = array<i64: 1, 56>}, {pipeline_mode = #tpu.pipeline_mode<synchronous>, transform_indices = @transform_7, window_bounds = array<i64: 3, 4, 7>}, {pipeline_mode = #tpu.pipeline_mode<synchronous>, transform_indices = @transform_8, window_bounds = array<i64: 3, 56, 64>}, {pipeline_mode = #tpu.pipeline_mode<synchronous>, transform_indices = @transform_9, window_bounds = array<i64: 1, 64>}, {pipeline_mode = #tpu.pipeline_mode<synchronous>, transform_indices = @transform_10, window_bounds = array<i64: 3, 1, 4>}, {pipeline_mode = #tpu.pipeline_mode<synchronous>, transform_indices = @transform_11, window_bounds = array<i64: 3, 64, 16>}, {pipeline_mode = #tpu.pipeline_mode<synchronous>, transform_indices = @transform_12, window_bounds = array<i64: 1, 16>}, {transform_indices = @transform_13, window_bounds = array<i64: 1, 1, 8>}, {transform_indices = @transform_14, window_bounds = array<i64: 1, 1, 8>}, {transform_indices = @transform_15, window_bounds = array<i64: 1, 1, 1>}]} {
    %c0 = arith.constant 0 : index
    %c0_0 = arith.constant 0 : index
    %c0_1 = arith.constant 0 : index
    %0 = vector.load %arg1[%c0, %c0_0, %c0_1] : memref<1x28x112xf32, #tpu.memory_space<vmem>>, vector<1x28x112xf32>
    %1 = vector.shape_cast %0 : vector<1x28x112xf32> to vector<28x112xf32>
    %2 = arith.truncf %1 : vector<28x112xf32> to vector<28x112xbf16>
    %c0_2 = arith.constant 0 : index
    %c0_3 = arith.constant 0 : index
    %c0_4 = arith.constant 0 : index
    %3 = vector.load %arg2[%c0_2, %c0_3, %c0_4] : memref<3x14x28xbf16, #tpu.memory_space<vmem>>, vector<1x14x28xbf16>
    %4 = vector.shape_cast %3 : vector<1x14x28xbf16> to vector<14x28xbf16>
    %cst = arith.constant dense<0.000000e+00> : vector<14x112xf32>
    %5 = tpu.matmul %4, %2, %cst {dimension_numbers = #tpu.dot_dimension_numbers<[1], [0], [0], [1], [0, 0, 1, 1], [], []>} : vector<14x28xbf16>, vector<28x112xbf16>, vector<14x112xf32> -> vector<14x112xf32>
    %6 = arith.truncf %5 : vector<14x112xf32> to vector<14x112xbf16>
    %c0_5 = arith.constant 0 : index
    %c0_6 = arith.constant 0 : index
    %c0_7 = arith.constant 0 : index
    %7 = vector.load %arg3[%c0_5, %c0_6, %c0_7] : memref<3x112x56xbf16, #tpu.memory_space<vmem>>, vector<1x112x56xbf16>
    %8 = vector.shape_cast %7 : vector<1x112x56xbf16> to vector<112x56xbf16>
    %cst_8 = arith.constant dense<0.000000e+00> : vector<14x56xf32>
    %9 = tpu.matmul %6, %8, %cst_8 {dimension_numbers = #tpu.dot_dimension_numbers<[1], [0], [0], [1], [0, 0, 1, 1], [], []>} : vector<14x112xbf16>, vector<112x56xbf16>, vector<14x56xf32> -> vector<14x56xf32>
    %c1 = arith.constant 1 : index
    %c0_9 = arith.constant 0 : index
    %c0_10 = arith.constant 0 : index
    %10 = vector.load %arg2[%c1, %c0_9, %c0_10] : memref<3x14x28xbf16, #tpu.memory_space<vmem>>, vector<1x14x28xbf16>
    %11 = vector.shape_cast %10 : vector<1x14x28xbf16> to vector<14x28xbf16>
    %cst_11 = arith.constant dense<0.000000e+00> : vector<14x112xf32>
    %12 = tpu.matmul %11, %2, %cst_11 {dimension_numbers = #tpu.dot_dimension_numbers<[1], [0], [0], [1], [0, 0, 1, 1], [], []>} : vector<14x28xbf16>, vector<28x112xbf16>, vector<14x112xf32> -> vector<14x112xf32>
    %13 = arith.truncf %12 : vector<14x112xf32> to vector<14x112xbf16>
    %c1_12 = arith.constant 1 : index
    %c0_13 = arith.constant 0 : index
    %c0_14 = arith.constant 0 : index
    %14 = vector.load %arg3[%c1_12, %c0_13, %c0_14] : memref<3x112x56xbf16, #tpu.memory_space<vmem>>, vector<1x112x56xbf16>
    %15 = vector.shape_cast %14 : vector<1x112x56xbf16> to vector<112x56xbf16>
    %cst_15 = arith.constant dense<0.000000e+00> : vector<14x56xf32>
    %16 = tpu.matmul %13, %15, %cst_15 {dimension_numbers = #tpu.dot_dimension_numbers<[1], [0], [0], [1], [0, 0, 1, 1], [], []>} : vector<14x112xbf16>, vector<112x56xbf16>, vector<14x56xf32> -> vector<14x56xf32>
    %17 = arith.addf %9, %16 : vector<14x56xf32>
    %c2 = arith.constant 2 : index
    %c0_16 = arith.constant 0 : index
    %c0_17 = arith.constant 0 : index
    %18 = vector.load %arg2[%c2, %c0_16, %c0_17] : memref<3x14x28xbf16, #tpu.memory_space<vmem>>, vector<1x14x28xbf16>
    %19 = vector.shape_cast %18 : vector<1x14x28xbf16> to vector<14x28xbf16>
    %cst_18 = arith.constant dense<0.000000e+00> : vector<14x112xf32>
    %20 = tpu.matmul %19, %2, %cst_18 {dimension_numbers = #tpu.dot_dimension_numbers<[1], [0], [0], [1], [0, 0, 1, 1], [], []>} : vector<14x28xbf16>, vector<28x112xbf16>, vector<14x112xf32> -> vector<14x112xf32>
    %21 = arith.truncf %20 : vector<14x112xf32> to vector<14x112xbf16>
    %c2_19 = arith.constant 2 : index
    %c0_20 = arith.constant 0 : index
    %c0_21 = arith.constant 0 : index
    %22 = vector.load %arg3[%c2_19, %c0_20, %c0_21] : memref<3x112x56xbf16, #tpu.memory_space<vmem>>, vector<1x112x56xbf16>
    %23 = vector.shape_cast %22 : vector<1x112x56xbf16> to vector<112x56xbf16>
    %cst_22 = arith.constant dense<0.000000e+00> : vector<14x56xf32>
    %24 = tpu.matmul %21, %23, %cst_22 {dimension_numbers = #tpu.dot_dimension_numbers<[1], [0], [0], [1], [0, 0, 1, 1], [], []>} : vector<14x112xbf16>, vector<112x56xbf16>, vector<14x56xf32> -> vector<14x56xf32>
    %25 = arith.addf %17, %24 : vector<14x56xf32>
    %c0_23 = arith.constant 0 : index
    %c0_24 = arith.constant 0 : index
    %26 = vector.load %arg4[%c0_23, %c0_24] : memref<1x56xf32, #tpu.memory_space<vmem>>, vector<1x56xf32>
    %27 = vector.broadcast %26 : vector<1x56xf32> to vector<14x56xf32>
    %28 = arith.addf %25, %27 : vector<14x56xf32>
    %cst_25 = arith.constant 0.000000e+00 : f32
    %29 = vector.broadcast %cst_25 : f32 to vector<14x56xf32>
    %30 = arith.cmpf oge, %28, %29 : vector<14x56xf32>
    %cst_26 = arith.constant 0.00999999977 : f32
    %31 = vector.broadcast %cst_26 : f32 to vector<14x56xf32>
    %32 = arith.mulf %28, %31 : vector<14x56xf32>
    %33 = arith.select %30, %28, %32 : vector<14x56xi1>, vector<14x56xf32>
    %34 = arith.truncf %33 : vector<14x56xf32> to vector<14x56xbf16>
    %c0_27 = arith.constant 0 : index
    %c0_28 = arith.constant 0 : index
    %c0_29 = arith.constant 0 : index
    %35 = vector.load %arg5[%c0_27, %c0_28, %c0_29] : memref<3x7x14xbf16, #tpu.memory_space<vmem>>, vector<1x7x14xbf16>
    %36 = vector.shape_cast %35 : vector<1x7x14xbf16> to vector<7x14xbf16>
    %cst_30 = arith.constant dense<0.000000e+00> : vector<7x56xf32>
    %37 = tpu.matmul %36, %34, %cst_30 {dimension_numbers = #tpu.dot_dimension_numbers<[1], [0], [0], [1], [0, 0, 1, 1], [], []>} : vector<7x14xbf16>, vector<14x56xbf16>, vector<7x56xf32> -> vector<7x56xf32>
    %38 = arith.truncf %37 : vector<7x56xf32> to vector<7x56xbf16>
    %c0_31 = arith.constant 0 : index
    %c0_32 = arith.constant 0 : index
    %c0_33 = arith.constant 0 : index
    %39 = vector.load %arg6[%c0_31, %c0_32, %c0_33] : memref<3x56x56xbf16, #tpu.memory_space<vmem>>, vector<1x56x56xbf16>
    %40 = vector.shape_cast %39 : vector<1x56x56xbf16> to vector<56x56xbf16>
    %cst_34 = arith.constant dense<0.000000e+00> : vector<7x56xf32>
    %41 = tpu.matmul %38, %40, %cst_34 {dimension_numbers = #tpu.dot_dimension_numbers<[1], [0], [0], [1], [0, 0, 1, 1], [], []>} : vector<7x56xbf16>, vector<56x56xbf16>, vector<7x56xf32> -> vector<7x56xf32>
    %c1_35 = arith.constant 1 : index
    %c0_36 = arith.constant 0 : index
    %c0_37 = arith.constant 0 : index
    %42 = vector.load %arg5[%c1_35, %c0_36, %c0_37] : memref<3x7x14xbf16, #tpu.memory_space<vmem>>, vector<1x7x14xbf16>
    %43 = vector.shape_cast %42 : vector<1x7x14xbf16> to vector<7x14xbf16>
    %cst_38 = arith.constant dense<0.000000e+00> : vector<7x56xf32>
    %44 = tpu.matmul %43, %34, %cst_38 {dimension_numbers = #tpu.dot_dimension_numbers<[1], [0], [0], [1], [0, 0, 1, 1], [], []>} : vector<7x14xbf16>, vector<14x56xbf16>, vector<7x56xf32> -> vector<7x56xf32>
    %45 = arith.truncf %44 : vector<7x56xf32> to vector<7x56xbf16>
    %c1_39 = arith.constant 1 : index
    %c0_40 = arith.constant 0 : index
    %c0_41 = arith.constant 0 : index
    %46 = vector.load %arg6[%c1_39, %c0_40, %c0_41] : memref<3x56x56xbf16, #tpu.memory_space<vmem>>, vector<1x56x56xbf16>
    %47 = vector.shape_cast %46 : vector<1x56x56xbf16> to vector<56x56xbf16>
    %cst_42 = arith.constant dense<0.000000e+00> : vector<7x56xf32>
    %48 = tpu.matmul %45, %47, %cst_42 {dimension_numbers = #tpu.dot_dimension_numbers<[1], [0], [0], [1], [0, 0, 1, 1], [], []>} : vector<7x56xbf16>, vector<56x56xbf16>, vector<7x56xf32> -> vector<7x56xf32>
    %49 = arith.addf %41, %48 : vector<7x56xf32>
    %c2_43 = arith.constant 2 : index
    %c0_44 = arith.constant 0 : index
    %c0_45 = arith.constant 0 : index
    %50 = vector.load %arg5[%c2_43, %c0_44, %c0_45] : memref<3x7x14xbf16, #tpu.memory_space<vmem>>, vector<1x7x14xbf16>
    %51 = vector.shape_cast %50 : vector<1x7x14xbf16> to vector<7x14xbf16>
    %cst_46 = arith.constant dense<0.000000e+00> : vector<7x56xf32>
    %52 = tpu.matmul %51, %34, %cst_46 {dimension_numbers = #tpu.dot_dimension_numbers<[1], [0], [0], [1], [0, 0, 1, 1], [], []>} : vector<7x14xbf16>, vector<14x56xbf16>, vector<7x56xf32> -> vector<7x56xf32>
    %53 = arith.truncf %52 : vector<7x56xf32> to vector<7x56xbf16>
    %c2_47 = arith.constant 2 : index
    %c0_48 = arith.constant 0 : index
    %c0_49 = arith.constant 0 : index
    %54 = vector.load %arg6[%c2_47, %c0_48, %c0_49] : memref<3x56x56xbf16, #tpu.memory_space<vmem>>, vector<1x56x56xbf16>
    %55 = vector.shape_cast %54 : vector<1x56x56xbf16> to vector<56x56xbf16>
    %cst_50 = arith.constant dense<0.000000e+00> : vector<7x56xf32>
    %56 = tpu.matmul %53, %55, %cst_50 {dimension_numbers = #tpu.dot_dimension_numbers<[1], [0], [0], [1], [0, 0, 1, 1], [], []>} : vector<7x56xbf16>, vector<56x56xbf16>, vector<7x56xf32> -> vector<7x56xf32>
    %57 = arith.addf %49, %56 : vector<7x56xf32>
    %c0_51 = arith.constant 0 : index
    %c0_52 = arith.constant 0 : index
    %58 = vector.load %arg7[%c0_51, %c0_52] : memref<1x56xf32, #tpu.memory_space<vmem>>, vector<1x56xf32>
    %59 = vector.broadcast %58 : vector<1x56xf32> to vector<7x56xf32>
    %60 = arith.addf %57, %59 : vector<7x56xf32>
    %cst_53 = arith.constant 0.000000e+00 : f32
    %61 = vector.broadcast %cst_53 : f32 to vector<7x56xf32>
    %62 = arith.cmpf oge, %60, %61 : vector<7x56xf32>
    %cst_54 = arith.constant 0.00999999977 : f32
    %63 = vector.broadcast %cst_54 : f32 to vector<7x56xf32>
    %64 = arith.mulf %60, %63 : vector<7x56xf32>
    %65 = arith.select %62, %60, %64 : vector<7x56xi1>, vector<7x56xf32>
    %66 = arith.truncf %65 : vector<7x56xf32> to vector<7x56xbf16>
    %c0_55 = arith.constant 0 : index
    %c0_56 = arith.constant 0 : index
    %c0_57 = arith.constant 0 : index
    %67 = vector.load %arg8[%c0_55, %c0_56, %c0_57] : memref<3x4x7xbf16, #tpu.memory_space<vmem>>, vector<1x4x7xbf16>
    %68 = vector.shape_cast %67 : vector<1x4x7xbf16> to vector<4x7xbf16>
    %cst_58 = arith.constant dense<0.000000e+00> : vector<4x56xf32>
    %69 = tpu.matmul %68, %66, %cst_58 {dimension_numbers = #tpu.dot_dimension_numbers<[1], [0], [0], [1], [0, 0, 1, 1], [], []>} : vector<4x7xbf16>, vector<7x56xbf16>, vector<4x56xf32> -> vector<4x56xf32>
    %70 = arith.truncf %69 : vector<4x56xf32> to vector<4x56xbf16>
    %c0_59 = arith.constant 0 : index
    %c0_60 = arith.constant 0 : index
    %c0_61 = arith.constant 0 : index
    %71 = vector.load %arg9[%c0_59, %c0_60, %c0_61] : memref<3x56x64xbf16, #tpu.memory_space<vmem>>, vector<1x56x64xbf16>
    %72 = vector.shape_cast %71 : vector<1x56x64xbf16> to vector<56x64xbf16>
    %cst_62 = arith.constant dense<0.000000e+00> : vector<4x64xf32>
    %73 = tpu.matmul %70, %72, %cst_62 {dimension_numbers = #tpu.dot_dimension_numbers<[1], [0], [0], [1], [0, 0, 1, 1], [], []>} : vector<4x56xbf16>, vector<56x64xbf16>, vector<4x64xf32> -> vector<4x64xf32>
    %c1_63 = arith.constant 1 : index
    %c0_64 = arith.constant 0 : index
    %c0_65 = arith.constant 0 : index
    %74 = vector.load %arg8[%c1_63, %c0_64, %c0_65] : memref<3x4x7xbf16, #tpu.memory_space<vmem>>, vector<1x4x7xbf16>
    %75 = vector.shape_cast %74 : vector<1x4x7xbf16> to vector<4x7xbf16>
    %cst_66 = arith.constant dense<0.000000e+00> : vector<4x56xf32>
    %76 = tpu.matmul %75, %66, %cst_66 {dimension_numbers = #tpu.dot_dimension_numbers<[1], [0], [0], [1], [0, 0, 1, 1], [], []>} : vector<4x7xbf16>, vector<7x56xbf16>, vector<4x56xf32> -> vector<4x56xf32>
    %77 = arith.truncf %76 : vector<4x56xf32> to vector<4x56xbf16>
    %c1_67 = arith.constant 1 : index
    %c0_68 = arith.constant 0 : index
    %c0_69 = arith.constant 0 : index
    %78 = vector.load %arg9[%c1_67, %c0_68, %c0_69] : memref<3x56x64xbf16, #tpu.memory_space<vmem>>, vector<1x56x64xbf16>
    %79 = vector.shape_cast %78 : vector<1x56x64xbf16> to vector<56x64xbf16>
    %cst_70 = arith.constant dense<0.000000e+00> : vector<4x64xf32>
    %80 = tpu.matmul %77, %79, %cst_70 {dimension_numbers = #tpu.dot_dimension_numbers<[1], [0], [0], [1], [0, 0, 1, 1], [], []>} : vector<4x56xbf16>, vector<56x64xbf16>, vector<4x64xf32> -> vector<4x64xf32>
    %81 = arith.addf %73, %80 : vector<4x64xf32>
    %c2_71 = arith.constant 2 : index
    %c0_72 = arith.constant 0 : index
    %c0_73 = arith.constant 0 : index
    %82 = vector.load %arg8[%c2_71, %c0_72, %c0_73] : memref<3x4x7xbf16, #tpu.memory_space<vmem>>, vector<1x4x7xbf16>
    %83 = vector.shape_cast %82 : vector<1x4x7xbf16> to vector<4x7xbf16>
    %cst_74 = arith.constant dense<0.000000e+00> : vector<4x56xf32>
    %84 = tpu.matmul %83, %66, %cst_74 {dimension_numbers = #tpu.dot_dimension_numbers<[1], [0], [0], [1], [0, 0, 1, 1], [], []>} : vector<4x7xbf16>, vector<7x56xbf16>, vector<4x56xf32> -> vector<4x56xf32>
    %85 = arith.truncf %84 : vector<4x56xf32> to vector<4x56xbf16>
    %c2_75 = arith.constant 2 : index
    %c0_76 = arith.constant 0 : index
    %c0_77 = arith.constant 0 : index
    %86 = vector.load %arg9[%c2_75, %c0_76, %c0_77] : memref<3x56x64xbf16, #tpu.memory_space<vmem>>, vector<1x56x64xbf16>
    %87 = vector.shape_cast %86 : vector<1x56x64xbf16> to vector<56x64xbf16>
    %cst_78 = arith.constant dense<0.000000e+00> : vector<4x64xf32>
    %88 = tpu.matmul %85, %87, %cst_78 {dimension_numbers = #tpu.dot_dimension_numbers<[1], [0], [0], [1], [0, 0, 1, 1], [], []>} : vector<4x56xbf16>, vector<56x64xbf16>, vector<4x64xf32> -> vector<4x64xf32>
    %89 = arith.addf %81, %88 : vector<4x64xf32>
    %c0_79 = arith.constant 0 : index
    %c0_80 = arith.constant 0 : index
    %90 = vector.load %arg10[%c0_79, %c0_80] : memref<1x64xf32, #tpu.memory_space<vmem>>, vector<1x64xf32>
    %91 = vector.broadcast %90 : vector<1x64xf32> to vector<4x64xf32>
    %92 = arith.addf %89, %91 : vector<4x64xf32>
    %93 = arith.truncf %92 : vector<4x64xf32> to vector<4x64xbf16>
    %c0_81 = arith.constant 0 : index
    %c0_82 = arith.constant 0 : index
    %c0_83 = arith.constant 0 : index
    %94 = vector.load %arg11[%c0_81, %c0_82, %c0_83] : memref<3x1x4xbf16, #tpu.memory_space<vmem>>, vector<1x1x4xbf16>
    %95 = vector.shape_cast %94 : vector<1x1x4xbf16> to vector<1x4xbf16>
    %cst_84 = arith.constant dense<0.000000e+00> : vector<1x64xf32>
    %96 = tpu.matmul %95, %93, %cst_84 {dimension_numbers = #tpu.dot_dimension_numbers<[1], [0], [0], [1], [0, 0, 1, 1], [], []>} : vector<1x4xbf16>, vector<4x64xbf16>, vector<1x64xf32> -> vector<1x64xf32>
    %97 = arith.truncf %96 : vector<1x64xf32> to vector<1x64xbf16>
    %c0_85 = arith.constant 0 : index
    %c0_86 = arith.constant 0 : index
    %c0_87 = arith.constant 0 : index
    %98 = vector.load %arg12[%c0_85, %c0_86, %c0_87] : memref<3x64x16xbf16, #tpu.memory_space<vmem>>, vector<1x64x16xbf16>
    %99 = vector.shape_cast %98 : vector<1x64x16xbf16> to vector<64x16xbf16>
    %cst_88 = arith.constant dense<0.000000e+00> : vector<1x16xf32>
    %100 = tpu.matmul %97, %99, %cst_88 {dimension_numbers = #tpu.dot_dimension_numbers<[1], [0], [0], [1], [0, 0, 1, 1], [], []>} : vector<1x64xbf16>, vector<64x16xbf16>, vector<1x16xf32> -> vector<1x16xf32>
    %c1_89 = arith.constant 1 : index
    %c0_90 = arith.constant 0 : index
    %c0_91 = arith.constant 0 : index
    %101 = vector.load %arg11[%c1_89, %c0_90, %c0_91] : memref<3x1x4xbf16, #tpu.memory_space<vmem>>, vector<1x1x4xbf16>
    %102 = vector.shape_cast %101 : vector<1x1x4xbf16> to vector<1x4xbf16>
    %cst_92 = arith.constant dense<0.000000e+00> : vector<1x64xf32>
    %103 = tpu.matmul %102, %93, %cst_92 {dimension_numbers = #tpu.dot_dimension_numbers<[1], [0], [0], [1], [0, 0, 1, 1], [], []>} : vector<1x4xbf16>, vector<4x64xbf16>, vector<1x64xf32> -> vector<1x64xf32>
    %104 = arith.truncf %103 : vector<1x64xf32> to vector<1x64xbf16>
    %c1_93 = arith.constant 1 : index
    %c0_94 = arith.constant 0 : index
    %c0_95 = arith.constant 0 : index
    %105 = vector.load %arg12[%c1_93, %c0_94, %c0_95] : memref<3x64x16xbf16, #tpu.memory_space<vmem>>, vector<1x64x16xbf16>
    %106 = vector.shape_cast %105 : vector<1x64x16xbf16> to vector<64x16xbf16>
    %cst_96 = arith.constant dense<0.000000e+00> : vector<1x16xf32>
    %107 = tpu.matmul %104, %106, %cst_96 {dimension_numbers = #tpu.dot_dimension_numbers<[1], [0], [0], [1], [0, 0, 1, 1], [], []>} : vector<1x64xbf16>, vector<64x16xbf16>, vector<1x16xf32> -> vector<1x16xf32>
    %108 = arith.addf %100, %107 : vector<1x16xf32>
    %c2_97 = arith.constant 2 : index
    %c0_98 = arith.constant 0 : index
    %c0_99 = arith.constant 0 : index
    %109 = vector.load %arg11[%c2_97, %c0_98, %c0_99] : memref<3x1x4xbf16, #tpu.memory_space<vmem>>, vector<1x1x4xbf16>
    %110 = vector.shape_cast %109 : vector<1x1x4xbf16> to vector<1x4xbf16>
    %cst_100 = arith.constant dense<0.000000e+00> : vector<1x64xf32>
    %111 = tpu.matmul %110, %93, %cst_100 {dimension_numbers = #tpu.dot_dimension_numbers<[1], [0], [0], [1], [0, 0, 1, 1], [], []>} : vector<1x4xbf16>, vector<4x64xbf16>, vector<1x64xf32> -> vector<1x64xf32>
    %112 = arith.truncf %111 : vector<1x64xf32> to vector<1x64xbf16>
    %c2_101 = arith.constant 2 : index
    %c0_102 = arith.constant 0 : index
    %c0_103 = arith.constant 0 : index
    %113 = vector.load %arg12[%c2_101, %c0_102, %c0_103] : memref<3x64x16xbf16, #tpu.memory_space<vmem>>, vector<1x64x16xbf16>
    %114 = vector.shape_cast %113 : vector<1x64x16xbf16> to vector<64x16xbf16>
    %cst_104 = arith.constant dense<0.000000e+00> : vector<1x16xf32>
    %115 = tpu.matmul %112, %114, %cst_104 {dimension_numbers = #tpu.dot_dimension_numbers<[1], [0], [0], [1], [0, 0, 1, 1], [], []>} : vector<1x64xbf16>, vector<64x16xbf16>, vector<1x16xf32> -> vector<1x16xf32>
    %116 = arith.addf %108, %115 : vector<1x16xf32>
    %c0_105 = arith.constant 0 : index
    %c0_106 = arith.constant 0 : index
    %117 = vector.load %arg13[%c0_105, %c0_106] : memref<1x16xf32, #tpu.memory_space<vmem>>, vector<1x16xf32>
    %118 = arith.addf %116, %117 : vector<1x16xf32>
    %119 = vector.extract_strided_slice %118 {offsets = [0, 0], sizes = [1, 8], strides = [1, 1]} : vector<1x16xf32> to vector<1x8xf32>
    %120 = vector.extract_strided_slice %118 {offsets = [0, 8], sizes = [1, 8], strides = [1, 1]} : vector<1x16xf32> to vector<1x8xf32>
    %cst_107 = arith.constant 0.000000e+00 : f32
    %121 = vector.broadcast %cst_107 : f32 to vector<1x8xf32>
    %122 = arith.maximumf %120, %121 : vector<1x8xf32>
    %123 = math.absf %120 : vector<1x8xf32>
    %cst_108 = arith.constant 0.000000e+00 : f32
    %124 = vector.broadcast %cst_108 : f32 to vector<1x8xf32>
    %125 = arith.subf %124, %123 : vector<1x8xf32>
    %126 = math.exp %125 : vector<1x8xf32>
    %cst_109 = arith.constant 1.000000e+00 : f32
    %127 = vector.broadcast %cst_109 : f32 to vector<1x8xf32>
    %128 = arith.addf %127, %126 : vector<1x8xf32>
    %129 = math.log %128 : vector<1x8xf32>
    %130 = arith.addf %122, %129 : vector<1x8xf32>
    %cst_110 = arith.constant 9.99999974E-6 : f32
    %131 = vector.broadcast %cst_110 : f32 to vector<1x8xf32>
    %132 = arith.addf %130, %131 : vector<1x8xf32>
    %c0_111 = arith.constant 0 : index
    %c0_112 = arith.constant 0 : index
    %c0_113 = arith.constant 0 : index
    %133 = vector.load %arg14[%c0_111, %c0_112, %c0_113] : memref<1x1x8xf32, #tpu.memory_space<vmem>>, vector<1x1x8xf32>
    %134 = vector.shape_cast %133 : vector<1x1x8xf32> to vector<1x8xf32>
    %135 = arith.mulf %132, %134 : vector<1x8xf32>
    %136 = arith.addf %119, %135 : vector<1x8xf32>
    %c0_114 = arith.constant 0 : index
    %c0_115 = arith.constant 0 : index
    %c0_116 = arith.constant 0 : index
    %137 = vector.load %arg15[%c0_114, %c0_115, %c0_116] : memref<1x1x8xf32, #tpu.memory_space<vmem>>, vector<1x1x8xf32>
    %138 = vector.shape_cast %137 : vector<1x1x8xf32> to vector<1x8xf32>
    %139 = vector.shape_cast %136 : vector<1x8xf32> to vector<1x1x8xf32>
    tpu.vector_store %arg15[%c0_114, %c0_115, %c0_116], %139 {strides = array<i32>} : memref<1x1x8xf32, #tpu.memory_space<vmem>>, vector<1x1x8xf32>,
    %cst_117 = arith.constant -5.000000e-01 : f32
    %140 = vector.broadcast %cst_117 : f32 to vector<1x8xf32>
    %141 = arith.mulf %140, %134 : vector<1x8xf32>
    %142 = arith.mulf %141, %134 : vector<1x8xf32>
    %143 = math.log %132 : vector<1x8xf32>
    %144 = arith.subf %142, %143 : vector<1x8xf32>
    %cst_118 = arith.constant 0.918938517 : f32
    %145 = vector.broadcast %cst_118 : f32 to vector<1x8xf32>
    %146 = arith.subf %144, %145 : vector<1x8xf32>
    %cst_119 = arith.constant dense<0.000000e+00> : vector<1xf32>
    %147 = vector.multi_reduction <add>, %146, %cst_119 [1] : vector<1x8xf32> to vector<1xf32>
    %148 = vector.shape_cast %147 : vector<1xf32> to vector<1x1xf32>
    %c0_120 = arith.constant 0 : index
    %c0_121 = arith.constant 0 : index
    %c0_122 = arith.constant 0 : index
    %149 = vector.load %arg16[%c0_120, %c0_121, %c0_122] : memref<1x1x1xf32, #tpu.memory_space<vmem>>, vector<1x1x1xf32>
    %150 = vector.shape_cast %149 : vector<1x1x1xf32> to vector<1x1xf32>
    %151 = vector.shape_cast %148 : vector<1x1xf32> to vector<1x1x1xf32>
    tpu.vector_store %arg16[%c0_120, %c0_121, %c0_122], %151 {strides = array<i32>} : memref<1x1x1xf32, #tpu.memory_space<vmem>>, vector<1x1x1xf32>,
    return
  }
  func.func @transform_0(%arg0: i32) -> (i32, i32, i32) {
    %c0_i32 = arith.constant 0 : i32
    %c0_i32_0 = arith.constant 0 : i32
    %c0_i32_1 = arith.constant 0 : i32
    return %arg0, %c0_i32, %c0_i32_0 : i32, i32, i32
  }
  func.func @transform_1(%arg0: i32) -> (i32, i32, i32) {
    %c0_i32 = arith.constant 0 : i32
    %c0_i32_0 = arith.constant 0 : i32
    %c0_i32_1 = arith.constant 0 : i32
    %c0_i32_2 = arith.constant 0 : i32
    return %c0_i32, %c0_i32_0, %c0_i32_1 : i32, i32, i32
  }
  func.func @transform_2(%arg0: i32) -> (i32, i32, i32) {
    %c0_i32 = arith.constant 0 : i32
    %c0_i32_0 = arith.constant 0 : i32
    %c0_i32_1 = arith.constant 0 : i32
    %c0_i32_2 = arith.constant 0 : i32
    return %c0_i32, %c0_i32_0, %c0_i32_1 : i32, i32, i32
  }
  func.func @transform_3(%arg0: i32) -> (i32, i32) {
    %c0_i32 = arith.constant 0 : i32
    %c0_i32_0 = arith.constant 0 : i32
    %c0_i32_1 = arith.constant 0 : i32
    return %c0_i32, %c0_i32_0 : i32, i32
  }
  func.func @transform_4(%arg0: i32) -> (i32, i32, i32) {
    %c0_i32 = arith.constant 0 : i32
    %c0_i32_0 = arith.constant 0 : i32
    %c0_i32_1 = arith.constant 0 : i32
    %c0_i32_2 = arith.constant 0 : i32
    return %c0_i32, %c0_i32_0, %c0_i32_1 : i32, i32, i32
  }
  func.func @transform_5(%arg0: i32) -> (i32, i32, i32) {
    %c0_i32 = arith.constant 0 : i32
    %c0_i32_0 = arith.constant 0 : i32
    %c0_i32_1 = arith.constant 0 : i32
    %c0_i32_2 = arith.constant 0 : i32
    return %c0_i32, %c0_i32_0, %c0_i32_1 : i32, i32, i32
  }
  func.func @transform_6(%arg0: i32) -> (i32, i32) {
    %c0_i32 = arith.constant 0 : i32
    %c0_i32_0 = arith.constant 0 : i32
    %c0_i32_1 = arith.constant 0 : i32
    return %c0_i32, %c0_i32_0 : i32, i32
  }
  func.func @transform_7(%arg0: i32) -> (i32, i32, i32) {
    %c0_i32 = arith.constant 0 : i32
    %c0_i32_0 = arith.constant 0 : i32
    %c0_i32_1 = arith.constant 0 : i32
    %c0_i32_2 = arith.constant 0 : i32
    return %c0_i32, %c0_i32_0, %c0_i32_1 : i32, i32, i32
  }
  func.func @transform_8(%arg0: i32) -> (i32, i32, i32) {
    %c0_i32 = arith.constant 0 : i32
    %c0_i32_0 = arith.constant 0 : i32
    %c0_i32_1 = arith.constant 0 : i32
    %c0_i32_2 = arith.constant 0 : i32
    return %c0_i32, %c0_i32_0, %c0_i32_1 : i32, i32, i32
  }
  func.func @transform_9(%arg0: i32) -> (i32, i32) {
    %c0_i32 = arith.constant 0 : i32
    %c0_i32_0 = arith.constant 0 : i32
    %c0_i32_1 = arith.constant 0 : i32
    return %c0_i32, %c0_i32_0 : i32, i32
  }
  func.func @transform_10(%arg0: i32) -> (i32, i32, i32) {
    %c0_i32 = arith.constant 0 : i32
    %c0_i32_0 = arith.constant 0 : i32
    %c0_i32_1 = arith.constant 0 : i32
    %c0_i32_2 = arith.constant 0 : i32
    return %c0_i32, %c0_i32_0, %c0_i32_1 : i32, i32, i32
  }
  func.func @transform_11(%arg0: i32) -> (i32, i32, i32) {
    %c0_i32 = arith.constant 0 : i32
    %c0_i32_0 = arith.constant 0 : i32
    %c0_i32_1 = arith.constant 0 : i32
    %c0_i32_2 = arith.constant 0 : i32
    return %c0_i32, %c0_i32_0, %c0_i32_1 : i32, i32, i32
  }
  func.func @transform_12(%arg0: i32) -> (i32, i32) {
    %c0_i32 = arith.constant 0 : i32
    %c0_i32_0 = arith.constant 0 : i32
    %c0_i32_1 = arith.constant 0 : i32
    return %c0_i32, %c0_i32_0 : i32, i32
  }
  func.func @transform_13(%arg0: i32) -> (i32, i32, i32) {
    %c0_i32 = arith.constant 0 : i32
    %c0_i32_0 = arith.constant 0 : i32
    %c0_i32_1 = arith.constant 0 : i32
    return %arg0, %c0_i32, %c0_i32_0 : i32, i32, i32
  }
  func.func @transform_14(%arg0: i32) -> (i32, i32, i32) {
    %c0_i32 = arith.constant 0 : i32
    %c0_i32_0 = arith.constant 0 : i32
    %c0_i32_1 = arith.constant 0 : i32
    return %arg0, %c0_i32, %c0_i32_0 : i32, i32, i32
  }
  func.func @transform_15(%arg0: i32) -> (i32, i32, i32) {
    %c0_i32 = arith.constant 0 : i32
    %c0_i32_0 = arith.constant 0 : i32
    %c0_i32_1 = arith.constant 0 : i32
    return %arg0, %c0_i32, %c0_i32_0 : i32, i32, i32
  }
}

</mosaic_0001>

<llo_original>
// kernel: qa_xmym_forward.1
$region0: #{qa_xmym_forward.1}
  #allocation0 [shape = 'u32[]', space=smem, size = 0x4, offset = 0x4, fixed_abs, tag = 'smem constant byte address 0x4 - core index']
  #allocation1 [shape = 'u32[144,128]{1,0:T(1,128)}', space=vmem, size = 0x12000, scoped, tag = 'internal scratch']
  %s0 = inlined_call_operand.vmem [shape: f32[2,28,112], index: 0, kind: input, shape index: {}]
  %s1 = inlined_call_operand.vmem [shape: bf16[3,14,28], index: 1, kind: input, shape index: {}]
  %s2 = inlined_call_operand.vmem [shape: bf16[3,112,56], index: 2, kind: input, shape index: {}]
  %s3 = inlined_call_operand.vmem [shape: f32[1,56], index: 3, kind: input, shape index: {}]
  %s4 = inlined_call_operand.vmem [shape: bf16[3,7,14], index: 4, kind: input, shape index: {}]
  %s5 = inlined_call_operand.vmem [shape: bf16[3,56,56], index: 5, kind: input, shape index: {}]
  %s6 = inlined_call_operand.vmem [shape: f32[1,56], index: 6, kind: input, shape index: {}]
  %s7 = inlined_call_operand.vmem [shape: bf16[3,4,7], index: 7, kind: input, shape index: {}]
  %s8 = inlined_call_operand.vmem [shape: bf16[3,56,64], index: 8, kind: input, shape index: {}]
  %s9 = inlined_call_operand.vmem [shape: f32[1,64], index: 9, kind: input, shape index: {}]
  %s10 = inlined_call_operand.vmem [shape: bf16[3,1,4], index: 10, kind: input, shape index: {}]
  %s11 = inlined_call_operand.vmem [shape: bf16[3,64,16], index: 11, kind: input, shape index: {}]
  %s12 = inlined_call_operand.vmem [shape: f32[1,16], index: 12, kind: input, shape index: {}]
  %s13 = inlined_call_operand.vmem [shape: f32[2,1,8], index: 13, kind: input, shape index: {}]
  %s14 = inlined_call_operand.hbm [shape: f32[2,1,8], index: 14, kind: output, shape index: {0}]
  %s15 = inlined_call_operand.vmem [shape: f32[2,1,1], index: 15, kind: output, shape index: {1}]
  %16 = xla_tuple %s14, %s15
  %s17 = sld [smem:[#allocation0]]
  $region97: #{qa_xmym_forward.1} parent=0
    _
  %s19 = ssub.s32 1, %s17
  %s20 = scalar_select 0, %s19, %s17
  $region1: #{qa_xmym_forward.1} parent=0
    #allocation2 [shape = 'u8[1024]{0}', space=vmem, size = 0x400, scoped, tag = 'output window, operand 0']
    #allocation3 [shape = 's32[2]{0}', space=sflag, size = 0x8, scoped, tag = 'scoped memory for qa_xmym_forward.1']
    %21 = vsyncpa [#allocation3], 0
    %s22 = scalar_lea.sflag [#allocation3], 1
    %23 = vsyncpa %s22, 0
    loop: start=0, step=1, limit=4
    $region2: #{qa_xmym_forward.1} parent=1 // loop_pre_header
      _
    $region3: #{qa_xmym_forward.1} parent=1 // loop_header
      %s25 = sphi 0, %s29
      %p26 = scmp.ge.s32.totalorder %s25, 4
      %s35 = sphi 0, %s37
      %s38 = sphi 0, %s35
      %s39 = sphi 0, %s38
      %s55 = sphi 0, %s39
      %s59 = sphi 0, %s59
      %s61 = sphi 0, %s59
      %s62 = sphi 0, %s61
      %s76 = sphi 0, %s62
      %s80 = sphi 0, %s80
      %s82 = sphi 0, %s80
      %s83 = sphi 0, %s82
      %s97 = sphi 0, %s83
      %s101 = sphi 0, %s101
      %s103 = sphi 0, %s101
      %s104 = sphi 0, %s103
      %s118 = sphi 0, %s104
      %s122 = sphi 0, %s122
      %s124 = sphi 0, %s122
      %s125 = sphi 0, %s124
      %s139 = sphi 0, %s125
      %s143 = sphi 0, %s143
      %s145 = sphi 0, %s143
      %s146 = sphi 0, %s145
      %s160 = sphi 0, %s146
      %s164 = sphi 0, %s164
      %s166 = sphi 0, %s164
      %s167 = sphi 0, %s166
      %s181 = sphi 0, %s167
      %s185 = sphi 0, %s185
      %s187 = sphi 0, %s185
      %s188 = sphi 0, %s187
      %s202 = sphi 0, %s188
      %s206 = sphi 0, %s206
      %s208 = sphi 0, %s206
      %s209 = sphi 0, %s208
      %s223 = sphi 0, %s209
      %s227 = sphi 0, %s227
      %s229 = sphi 0, %s227
      %s230 = sphi 0, %s229
      %s244 = sphi 0, %s230
      %s248 = sphi 0, %s248
      %s250 = sphi 0, %s248
      %s251 = sphi 0, %s250
      %s265 = sphi 0, %s251
      %s269 = sphi 0, %s269
      %s271 = sphi 0, %s269
      %s272 = sphi 0, %s271
      %s286 = sphi 0, %s272
      %s290 = sphi 0, %s290
      %s292 = sphi 0, %s290
      %s293 = sphi 0, %s292
      %s307 = sphi 0, %s293
      %s313 = sphi 0, %s315
      %s316 = sphi 0, %s313
      %s317 = sphi 0, %s316
      %s333 = sphi 0, %s317
      %s339 = sphi 0, %s341
      %s342 = sphi 0, %s339
      %s343 = sphi 0, %s342
      %s359 = sphi 0, %s343
      %s365 = sphi 0, %s367
      %s368 = sphi 0, %s365
      %s369 = sphi 0, %s368
      %s385 = sphi 0, %s369
    $region4: #{qa_xmym_forward.1} parent=1 // loop_header_branch
      %28 = sbr.rel (%p26) target = $region8
    $region5: #{qa_xmym_forward.1} parent=1 // loop_body
      %s30 = ssub.s32 %s25, 1
      %s31 = ssub.s32 %s25, 2
      %s32 = sadd.s32 %s25, 1
      %s33 = ssub.s32 %s25, %s32
      %p34 = scmp.eq.s32.totalorder %s33, 0
      %s36 = sadd.s32 %s35, 1
      %s37 = scalar_select %p34, %s35, %s36
      %p40 = pneg %p34
      %p41 = scmp.eq.s32.totalorder %s25, 1
      %p42 = por %p40, %p41
      %p43 = scmp.ne.s32.totalorder %s35, %s38
      %p44 = scmp.eq.s32.totalorder %s25, 0
      %p45 = por %p43, %p44
      %p46 = scmp.ne.s32.totalorder %s35, %s38
      %p47 = scmp.eq.s32.totalorder %s30, 1
      %p48 = por %p46, %p47
      %p49 = scmp.ne.s32.totalorder %s38, %s39
      %p50 = scmp.eq.s32.totalorder %s30, 0
      %p51 = por %p49, %p50
      %p52 = scmp.ne.s32.totalorder %s38, %s39
      %p53 = scmp.eq.s32.totalorder %s31, 1
      %p54 = por %p52, %p53
      %p56 = scmp.ne.s32.totalorder %s39, %s55
      %p57 = scmp.eq.s32.totalorder %s31, 0
      %p58 = por %p56, %p57
      %s60 = sadd.s32 %s59, 1
      %p63 = scmp.eq.s32.totalorder %s25, 1
      %p64 = scmp.ne.s32.totalorder %s59, %s61
      %p65 = scmp.eq.s32.totalorder %s25, 0
      %p66 = por %p64, %p65
      %p67 = scmp.ne.s32.totalorder %s59, %s61
      %p68 = scmp.eq.s32.totalorder %s30, 1
      %p69 = por %p67, %p68
      %p70 = scmp.ne.s32.totalorder %s61, %s62
      %p71 = scmp.eq.s32.totalorder %s30, 0
      %p72 = por %p70, %p71
      %p73 = scmp.ne.s32.totalorder %s61, %s62
      %p74 = scmp.eq.s32.totalorder %s31, 1
      %p75 = por %p73, %p74
      %p77 = scmp.ne.s32.totalorder %s62, %s76
      %p78 = scmp.eq.s32.totalorder %s31, 0
      %p79 = por %p77, %p78
      %s81 = sadd.s32 %s80, 1
      %p84 = scmp.eq.s32.totalorder %s25, 1
      %p85 = scmp.ne.s32.totalorder %s80, %s82
      %p86 = scmp.eq.s32.totalorder %s25, 0
      %p87 = por %p85, %p86
      %p88 = scmp.ne.s32.totalorder %s80, %s82
      %p89 = scmp.eq.s32.totalorder %s30, 1
      %p90 = por %p88, %p89
      %p91 = scmp.ne.s32.totalorder %s82, %s83
      %p92 = scmp.eq.s32.totalorder %s30, 0
      %p93 = por %p91, %p92
      %p94 = scmp.ne.s32.totalorder %s82, %s83
      %p95 = scmp.eq.s32.totalorder %s31, 1
      %p96 = por %p94, %p95
      %p98 = scmp.ne.s32.totalorder %s83, %s97
      %p99 = scmp.eq.s32.totalorder %s31, 0
      %p100 = por %p98, %p99
      %s102 = sadd.s32 %s101, 1
      %p105 = scmp.eq.s32.totalorder %s25, 1
      %p106 = scmp.ne.s32.totalorder %s101, %s103
      %p107 = scmp.eq.s32.totalorder %s25, 0
      %p108 = por %p106, %p107
      %p109 = scmp.ne.s32.totalorder %s101, %s103
      %p110 = scmp.eq.s32.totalorder %s30, 1
      %p111 = por %p109, %p110
      %p112 = scmp.ne.s32.totalorder %s103, %s104
      %p113 = scmp.eq.s32.totalorder %s30, 0
      %p114 = por %p112, %p113
      %p115 = scmp.ne.s32.totalorder %s103, %s104
      %p116 = scmp.eq.s32.totalorder %s31, 1
      %p117 = por %p115, %p116
      %p119 = scmp.ne.s32.totalorder %s104, %s118
      %p120 = scmp.eq.s32.totalorder %s31, 0
      %p121 = por %p119, %p120
      %s123 = sadd.s32 %s122, 1
      %p126 = scmp.eq.s32.totalorder %s25, 1
      %p127 = scmp.ne.s32.totalorder %s122, %s124
      %p128 = scmp.eq.s32.totalorder %s25, 0
      %p129 = por %p127, %p128
      %p130 = scmp.ne.s32.totalorder %s122, %s124
      %p131 = scmp.eq.s32.totalorder %s30, 1
      %p132 = por %p130, %p131
      %p133 = scmp.ne.s32.totalorder %s124, %s125
      %p134 = scmp.eq.s32.totalorder %s30, 0
      %p135 = por %p133, %p134
      %p136 = scmp.ne.s32.totalorder %s124, %s125
      %p137 = scmp.eq.s32.totalorder %s31, 1
      %p138 = por %p136, %p137
      %p140 = scmp.ne.s32.totalorder %s125, %s139
      %p141 = scmp.eq.s32.totalorder %s31, 0
      %p142 = por %p140, %p141
      %s144 = sadd.s32 %s143, 1
      %p147 = scmp.eq.s32.totalorder %s25, 1
      %p148 = scmp.ne.s32.totalorder %s143, %s145
      %p149 = scmp.eq.s32.totalorder %s25, 0
      %p150 = por %p148, %p149
      %p151 = scmp.ne.s32.totalorder %s143, %s145
      %p152 = scmp.eq.s32.totalorder %s30, 1
      %p153 = por %p151, %p152
      %p154 = scmp.ne.s32.totalorder %s145, %s146
      %p155 = scmp.eq.s32.totalorder %s30, 0
      %p156 = por %p154, %p155
      %p157 = scmp.ne.s32.totalorder %s145, %s146
      %p158 = scmp.eq.s32.totalorder %s31, 1
      %p159 = por %p157, %p158
      %p161 = scmp.ne.s32.totalorder %s146, %s160
      %p162 = scmp.eq.s32.totalorder %s31, 0
      %p163 = por %p161, %p162
      %s165 = sadd.s32 %s164, 1
      %p168 = scmp.eq.s32.totalorder %s25, 1
      %p169 = scmp.ne.s32.totalorder %s164, %s166
      %p170 = scmp.eq.s32.totalorder %s25, 0
      %p171 = por %p169, %p170
      %p172 = scmp.ne.s32.totalorder %s164, %s166
      %p173 = scmp.eq.s32.totalorder %s30, 1
      %p174 = por %p172, %p173
      %p175 = scmp.ne.s32.totalorder %s166, %s167
      %p176 = scmp.eq.s32.totalorder %s30, 0
      %p177 = por %p175, %p176
      %p178 = scmp.ne.s32.totalorder %s166, %s167
      %p179 = scmp.eq.s32.totalorder %s31, 1
      %p180 = por %p178, %p179
      %p182 = scmp.ne.s32.totalorder %s167, %s181
      %p183 = scmp.eq.s32.totalorder %s31, 0
      %p184 = por %p182, %p183
      %s186 = sadd.s32 %s185, 1
      %p189 = scmp.eq.s32.totalorder %s25, 1
      %p190 = scmp.ne.s32.totalorder %s185, %s187
      %p191 = scmp.eq.s32.totalorder %s25, 0
      %p192 = por %p190, %p191
      %p193 = scmp.ne.s32.totalorder %s185, %s187
      %p194 = scmp.eq.s32.totalorder %s30, 1
      %p195 = por %p193, %p194
      %p196 = scmp.ne.s32.totalorder %s187, %s188
      %p197 = scmp.eq.s32.totalorder %s30, 0
      %p198 = por %p196, %p197
      %p199 = scmp.ne.s32.totalorder %s187, %s188
      %p200 = scmp.eq.s32.totalorder %s31, 1
      %p201 = por %p199, %p200
      %p203 = scmp.ne.s32.totalorder %s188, %s202
      %p204 = scmp.eq.s32.totalorder %s31, 0
      %p205 = por %p203, %p204
      %s207 = sadd.s32 %s206, 1
      %p210 = scmp.eq.s32.totalorder %s25, 1
      %p211 = scmp.ne.s32.totalorder %s206, %s208
      %p212 = scmp.eq.s32.totalorder %s25, 0
      %p213 = por %p211, %p212
      %p214 = scmp.ne.s32.totalorder %s206, %s208
      %p215 = scmp.eq.s32.totalorder %s30, 1
      %p216 = por %p214, %p215
      %p217 = scmp.ne.s32.totalorder %s208, %s209
      %p218 = scmp.eq.s32.totalorder %s30, 0
      %p219 = por %p217, %p218
      %p220 = scmp.ne.s32.totalorder %s208, %s209
      %p221 = scmp.eq.s32.totalorder %s31, 1
      %p222 = por %p220, %p221
      %p224 = scmp.ne.s32.totalorder %s209, %s223
      %p225 = scmp.eq.s32.totalorder %s31, 0
      %p226 = por %p224, %p225
      %s228 = sadd.s32 %s227, 1
      %p231 = scmp.eq.s32.totalorder %s25, 1
      %p232 = scmp.ne.s32.totalorder %s227, %s229
      %p233 = scmp.eq.s32.totalorder %s25, 0
      %p234 = por %p232, %p233
      %p235 = scmp.ne.s32.totalorder %s227, %s229
      %p236 = scmp.eq.s32.totalorder %s30, 1
      %p237 = por %p235, %p236
      %p238 = scmp.ne.s32.totalorder %s229, %s230
      %p239 = scmp.eq.s32.totalorder %s30, 0
      %p240 = por %p238, %p239
      %p241 = scmp.ne.s32.totalorder %s229, %s230
      %p242 = scmp.eq.s32.totalorder %s31, 1
      %p243 = por %p241, %p242
      %p245 = scmp.ne.s32.totalorder %s230, %s244
      %p246 = scmp.eq.s32.totalorder %s31, 0
      %p247 = por %p245, %p246
      %s249 = sadd.s32 %s248, 1
      %p252 = scmp.eq.s32.totalorder %s25, 1
      %p253 = scmp.ne.s32.totalorder %s248, %s250
      %p254 = scmp.eq.s32.totalorder %s25, 0
      %p255 = por %p253, %p254
      %p256 = scmp.ne.s32.totalorder %s248, %s250
      %p257 = scmp.eq.s32.totalorder %s30, 1
      %p258 = por %p256, %p257
      %p259 = scmp.ne.s32.totalorder %s250, %s251
      %p260 = scmp.eq.s32.totalorder %s30, 0
      %p261 = por %p259, %p260
      %p262 = scmp.ne.s32.totalorder %s250, %s251
      %p263 = scmp.eq.s32.totalorder %s31, 1
      %p264 = por %p262, %p263
      %p266 = scmp.ne.s32.totalorder %s251, %s265
      %p267 = scmp.eq.s32.totalorder %s31, 0
      %p268 = por %p266, %p267
      %s270 = sadd.s32 %s269, 1
      %p273 = scmp.eq.s32.totalorder %s25, 1
      %p274 = scmp.ne.s32.totalorder %s269, %s271
      %p275 = scmp.eq.s32.totalorder %s25, 0
      %p276 = por %p274, %p275
      %p277 = scmp.ne.s32.totalorder %s269, %s271
      %p278 = scmp.eq.s32.totalorder %s30, 1
      %p279 = por %p277, %p278
      %p280 = scmp.ne.s32.totalorder %s271, %s272
      %p281 = scmp.eq.s32.totalorder %s30, 0
      %p282 = por %p280, %p281
      %p283 = scmp.ne.s32.totalorder %s271, %s272
      %p284 = scmp.eq.s32.totalorder %s31, 1
      %p285 = por %p283, %p284
      %p287 = scmp.ne.s32.totalorder %s272, %s286
      %p288 = scmp.eq.s32.totalorder %s31, 0
      %p289 = por %p287, %p288
      %s291 = sadd.s32 %s290, 1
      %p294 = scmp.eq.s32.totalorder %s25, 1
      %p295 = scmp.ne.s32.totalorder %s290, %s292
      %p296 = scmp.eq.s32.totalorder %s25, 0
      %p297 = por %p295, %p296
      %p298 = scmp.ne.s32.totalorder %s290, %s292
      %p299 = scmp.eq.s32.totalorder %s30, 1
      %p300 = por %p298, %p299
      %p301 = scmp.ne.s32.totalorder %s292, %s293
      %p302 = scmp.eq.s32.totalorder %s30, 0
      %p303 = por %p301, %p302
      %p304 = scmp.ne.s32.totalorder %s292, %s293
      %p305 = scmp.eq.s32.totalorder %s31, 1
      %p306 = por %p304, %p305
      %p308 = scmp.ne.s32.totalorder %s293, %s307
      %p309 = scmp.eq.s32.totalorder %s31, 0
      %p310 = por %p308, %p309
      %s311 = ssub.s32 %s25, %s32
      %p312 = scmp.eq.s32.totalorder %s311, 0
      %s314 = sadd.s32 %s313, 1
      %s315 = scalar_select %p312, %s313, %s314
      %p318 = pneg %p312
      %p319 = scmp.eq.s32.totalorder %s25, 1
      %p320 = por %p318, %p319
      %p321 = scmp.ne.s32.totalorder %s313, %s316
      %p322 = scmp.eq.s32.totalorder %s25, 0
      %p323 = por %p321, %p322
      %p324 = scmp.ne.s32.totalorder %s313, %s316
      %p325 = scmp.eq.s32.totalorder %s30, 1
      %p326 = por %p324, %p325
      %p327 = scmp.ne.s32.totalorder %s316, %s317
      %p328 = scmp.eq.s32.totalorder %s30, 0
      %p329 = por %p327, %p328
      %p330 = scmp.ne.s32.totalorder %s316, %s317
      %p331 = scmp.eq.s32.totalorder %s31, 1
      %p332 = por %p330, %p331
      %p334 = scmp.ne.s32.totalorder %s317, %s333
      %p335 = scmp.eq.s32.totalorder %s31, 0
      %p336 = por %p334, %p335
      %s337 = ssub.s32 %s25, %s32
      %p338 = scmp.eq.s32.totalorder %s337, 0
      %s340 = sadd.s32 %s339, 1
      %s341 = scalar_select %p338, %s339, %s340
      %p344 = pneg %p338
      %p345 = scmp.eq.s32.totalorder %s25, 1
      %p346 = por %p344, %p345
      %p347 = scmp.ne.s32.totalorder %s339, %s342
      %p348 = scmp.eq.s32.totalorder %s25, 0
      %p349 = por %p347, %p348
      %p350 = scmp.ne.s32.totalorder %s339, %s342
      %p351 = scmp.eq.s32.totalorder %s30, 1
      %p352 = por %p350, %p351
      %p353 = scmp.ne.s32.totalorder %s342, %s343
      %p354 = scmp.eq.s32.totalorder %s30, 0
      %p355 = por %p353, %p354
      %p356 = scmp.ne.s32.totalorder %s342, %s343
      %p357 = scmp.eq.s32.totalorder %s31, 1
      %p358 = por %p356, %p357
      %p360 = scmp.ne.s32.totalorder %s343, %s359
      %p361 = scmp.eq.s32.totalorder %s31, 0
      %p362 = por %p360, %p361
      %s363 = ssub.s32 %s25, %s32
      %p364 = scmp.eq.s32.totalorder %s363, 0
      %s366 = sadd.s32 %s365, 1
      %s367 = scalar_select %p364, %s365, %s366
      %p370 = pneg %p364
      %p371 = scmp.eq.s32.totalorder %s25, 1
      %p372 = por %p370, %p371
      %p373 = scmp.ne.s32.totalorder %s365, %s368
      %p374 = scmp.eq.s32.totalorder %s25, 0
      %p375 = por %p373, %p374
      %p376 = scmp.ne.s32.totalorder %s365, %s368
      %p377 = scmp.eq.s32.totalorder %s30, 1
      %p378 = por %p376, %p377
      %p379 = scmp.ne.s32.totalorder %s368, %s369
      %p380 = scmp.eq.s32.totalorder %s30, 0
      %p381 = por %p379, %p380
      %p382 = scmp.ne.s32.totalorder %s368, %s369
      %p383 = scmp.eq.s32.totalorder %s31, 1
      %p384 = por %p382, %p383
      %p386 = scmp.ne.s32.totalorder %s369, %s385
      %p387 = scmp.eq.s32.totalorder %s31, 0
      %p388 = por %p386, %p387
      %p389 = scmp.le.s32.totalorder 1, %s25
      %p390 = scmp.lt.s32.totalorder %s25, 3
      %p391 = pnand %p389, %p390
      %p392 = pneg %p391
      // Predicated region
      $region9: #{qa_xmym_forward.1} parent=5 // pred_check
        _
      $region10: #{qa_xmym_forward.1} parent=5 // pred_check_branch
        %394 = sbr.rel (%p391) target = $region12
      $region11: #{qa_xmym_forward.1} parent=5 // pred_region
        %s395 = ssub.s32 %s25, 1
        // Predicated region
        $region13: #{qa_xmym_forward.1} parent=11 // pred_check
          %p396 = pneg %p72
        $region14: #{qa_xmym_forward.1} parent=11 // pred_check_branch
          %398 = sbr.rel (%p396) target = $region16
        $region15: #{qa_xmym_forward.1} parent=11 // pred_region
          _
        $region16: #{qa_xmym_forward.1} parent=11 // pred_fallthru
          _
        // Predicated region
        $region17: #{qa_xmym_forward.1} parent=11 // pred_check
          %p399 = pneg %p93
        $region18: #{qa_xmym_forward.1} parent=11 // pred_check_branch
          %401 = sbr.rel (%p399) target = $region20
        $region19: #{qa_xmym_forward.1} parent=11 // pred_region
          _
        $region20: #{qa_xmym_forward.1} parent=11 // pred_fallthru
          _
        // Predicated region
        $region21: #{qa_xmym_forward.1} parent=11 // pred_check
          %p402 = pneg %p114
        $region22: #{qa_xmym_forward.1} parent=11 // pred_check_branch
          %404 = sbr.rel (%p402) target = $region24
        $region23: #{qa_xmym_forward.1} parent=11 // pred_region
          _
        $region24: #{qa_xmym_forward.1} parent=11 // pred_fallthru
          _
        // Predicated region
        $region25: #{qa_xmym_forward.1} parent=11 // pred_check
          %p405 = pneg %p135
        $region26: #{qa_xmym_forward.1} parent=11 // pred_check_branch
          %407 = sbr.rel (%p405) target = $region28
        $region27: #{qa_xmym_forward.1} parent=11 // pred_region
          _
        $region28: #{qa_xmym_forward.1} parent=11 // pred_fallthru
          _
        // Predicated region
        $region29: #{qa_xmym_forward.1} parent=11 // pred_check
          %p408 = pneg %p156
        $region30: #{qa_xmym_forward.1} parent=11 // pred_check_branch
          %410 = sbr.rel (%p408) target = $region32
        $region31: #{qa_xmym_forward.1} parent=11 // pred_region
          _
        $region32: #{qa_xmym_forward.1} parent=11 // pred_fallthru
          _
        // Predicated region
        $region33: #{qa_xmym_forward.1} parent=11 // pred_check
          %p411 = pneg %p177
        $region34: #{qa_xmym_forward.1} parent=11 // pred_check_branch
          %413 = sbr.rel (%p411) target = $region36
        $region35: #{qa_xmym_forward.1} parent=11 // pred_region
          _
        $region36: #{qa_xmym_forward.1} parent=11 // pred_fallthru
          _
        // Predicated region
        $region37: #{qa_xmym_forward.1} parent=11 // pred_check
          %p414 = pneg %p198
        $region38: #{qa_xmym_forward.1} parent=11 // pred_check_branch
          %416 = sbr.rel (%p414) target = $region40
        $region39: #{qa_xmym_forward.1} parent=11 // pred_region
          _
        $region40: #{qa_xmym_forward.1} parent=11 // pred_fallthru
          _
        // Predicated region
        $region41: #{qa_xmym_forward.1} parent=11 // pred_check
          %p417 = pneg %p219
        $region42: #{qa_xmym_forward.1} parent=11 // pred_check_branch
          %419 = sbr.rel (%p417) target = $region44
        $region43: #{qa_xmym_forward.1} parent=11 // pred_region
          _
        $region44: #{qa_xmym_forward.1} parent=11 // pred_fallthru
          _
        // Predicated region
        $region45: #{qa_xmym_forward.1} parent=11 // pred_check
          %p420 = pneg %p240
        $region46: #{qa_xmym_forward.1} parent=11 // pred_check_branch
          %422 = sbr.rel (%p420) target = $region48
        $region47: #{qa_xmym_forward.1} parent=11 // pred_region
          _
        $region48: #{qa_xmym_forward.1} parent=11 // pred_fallthru
          _
        // Predicated region
        $region49: #{qa_xmym_forward.1} parent=11 // pred_check
          %p423 = pneg %p261
        $region50: #{qa_xmym_forward.1} parent=11 // pred_check_branch
          %425 = sbr.rel (%p423) target = $region52
        $region51: #{qa_xmym_forward.1} parent=11 // pred_region
          _
        $region52: #{qa_xmym_forward.1} parent=11 // pred_fallthru
          _
        // Predicated region
        $region53: #{qa_xmym_forward.1} parent=11 // pred_check
          %p426 = pneg %p282
        $region54: #{qa_xmym_forward.1} parent=11 // pred_check_branch
          %428 = sbr.rel (%p426) target = $region56
        $region55: #{qa_xmym_forward.1} parent=11 // pred_region
          _
        $region56: #{qa_xmym_forward.1} parent=11 // pred_fallthru
          _
        // Predicated region
        $region57: #{qa_xmym_forward.1} parent=11 // pred_check
          %p429 = pneg %p303
        $region58: #{qa_xmym_forward.1} parent=11 // pred_check_branch
          %431 = sbr.rel (%p429) target = $region60
        $region59: #{qa_xmym_forward.1} parent=11 // pred_region
          _
        $region60: #{qa_xmym_forward.1} parent=11 // pred_fallthru
          _
      $region12: #{qa_xmym_forward.1} parent=5 // pred_fallthru
        _
      %p432 = scmp.lt.s32.totalorder %s25, 2
      // Predicated region
      $region61: #{qa_xmym_forward.1} parent=5 // pred_check
        %p433 = pneg %p432
      $region62: #{qa_xmym_forward.1} parent=5 // pred_check_branch
        %435 = sbr.rel (%p433) target = $region64
      $region63: #{qa_xmym_forward.1} parent=5 // pred_region
        // Predicated region
        $region65: #{qa_xmym_forward.1} parent=63 // pred_check
          %p436 = pneg %p45
        $region66: #{qa_xmym_forward.1} parent=63 // pred_check_branch
          %438 = sbr.rel (%p436) target = $region68
        $region67: #{qa_xmym_forward.1} parent=63 // pred_region
          %p439 = scmp.lt.s32.totalorder %s25, 1
          %s440 = scalar_select %p439, %s25, 1
          %s441 = smul.addr %s440, 4
          %s442 = smul.addr %s441, 8
          %s443 = scalar_lea.vmem %s0, %s442
        $region68: #{qa_xmym_forward.1} parent=63 // pred_fallthru
          _
        // Predicated region
        $region69: #{qa_xmym_forward.1} parent=63 // pred_check
          %p444 = pneg %p323
        $region70: #{qa_xmym_forward.1} parent=63 // pred_check_branch
          %446 = sbr.rel (%p444) target = $region72
        $region71: #{qa_xmym_forward.1} parent=63 // pred_region
          %p447 = scmp.lt.s32.totalorder %s25, 1
          %s448 = scalar_select %p447, %s25, 1
          %s449 = scalar_lea.vmem %s13, %s448
        $region72: #{qa_xmym_forward.1} parent=63 // pred_fallthru
          _
      $region64: #{qa_xmym_forward.1} parent=5 // pred_fallthru
        _
      %p450 = scmp.le.s32.totalorder 1, %s25
      %p451 = scmp.lt.s32.totalorder %s25, 3
      %p452 = pnand %p450, %p451
      %p453 = pneg %p452
      // Predicated region
      $region73: #{qa_xmym_forward.1} parent=5 // pred_check
        _
      $region74: #{qa_xmym_forward.1} parent=5 // pred_check_branch
        %455 = sbr.rel (%p452) target = $region76
      $region75: #{qa_xmym_forward.1} parent=5 // pred_region
        %s456 = ssub.s32 %s25, 1
        %p457 = scmp.lt.s32.totalorder %s30, 1
        %s458 = scalar_select %p457, %s30, 1
        %s459 = smul.addr %s458, 4
        %s460 = smul.addr %s459, 8
        %s461 = scalar_lea.vmem %s0, %s460
        %p462 = pneg %p51
        %p463 = pneg %p48
        %p464 = pneg %p72
        %p465 = pneg %p69
        %p466 = pneg %p93
        %p467 = pneg %p90
        %p468 = pneg %p114
        %p469 = pneg %p111
        %p470 = pneg %p135
        %p471 = pneg %p132
        %p472 = pneg %p156
        %p473 = pneg %p153
        %p474 = pneg %p177
        %p475 = pneg %p174
        %p476 = pneg %p198
        %p477 = pneg %p195
        %p478 = pneg %p219
        %p479 = pneg %p216
        %p480 = pneg %p240
        %p481 = pneg %p237
        %p482 = pneg %p261
        %p483 = pneg %p258
        %p484 = pneg %p282
        %p485 = pneg %p279
        %p486 = pneg %p303
        %p487 = pneg %p300
        %p488 = scmp.lt.s32.totalorder %s30, 1
        %s489 = scalar_select %p488, %s30, 1
        %s490 = scalar_lea.vmem %s13, %s489
        %p491 = pneg %p329
        %p492 = pneg %p326
        %p493 = pneg %p355
        %p494 = pneg %p352
        %s495 = sand.u32 %s342, 1
        %s496 = scalar_lea.sflag [#allocation3], %s495
        %s497 = sand.u32 %s342, 1
        %s498 = scalar_lea.vmem [#allocation2], %s497
        %p499 = pneg %p381
        %p500 = pneg %p378
        %p501 = scmp.lt.s32.totalorder %s30, 1
        %s502 = scalar_select %p501, %s30, 1
        %s503 = scalar_lea.vmem %s15, %s502
        %p504 = scmp.lt.s32.totalorder %s30, 1
        %s505 = scalar_select %p504, %s30, 1
        %s506 = smul.addr %s505, 4
        %s507 = smul.addr %s506, 8
        %s508 = scalar_lea.vmem %s0, %s507
        %p509 = scmp.lt.s32.totalorder %s30, 1
        %s510 = scalar_select %p509, %s30, 1
        %s511 = scalar_lea.vmem %s13, %s510
        %p512 = scmp.lt.s32.totalorder %s30, 1
        %s513 = scalar_select %p512, %s30, 1
        %s514 = scalar_lea.vmem %s15, %s513
        %v516 = vld [vmem:[%s508] sm:$0xff]
        %v517 = vld [vmem:[%s508 + $0x8] sm:$0xff]
        %v518 = vld [vmem:[%s508 + $0x10] sm:$0xff]
        %v519 = vld [vmem:[%s508 + $0x18] sm:$0xf]
        %v520 = vpack.c.bf16 %v517, %v516
        %v521 = vpack.c.bf16 %v519, %v518
        %v522 = vld [vmem:[%s1] sm:$0xf]
        %v523 = vld [vmem:[%s1 + $0x4] sm:$0x7]
        %v526 = vunpack.c.l.b16 %v522
        %v527 = vunpack.c.l.b16 %v523
        %v528 = vpack.c.b16 %v527, %v526
        %vm529 = vcmask 228352
        %v531 = vsel %vm529, %v528, 0
        %vm533 = vcmask 1045504
        %v535 = vsel %vm533, %v521, 0
        %537 = vmatprep.subr.bf16.mxu0 0
        %538 = vmatpush1.bf16.msra.mxu0 %v520
        %539 = vmatprep.subr.bf16.mxu0 0
        %540 = vmatpush1.bf16.msra.mxu0 %v535
        %541 = vmatprep.subr.bf16.mxu0 0
        %542 = vmatpush1.bf16.msra.mxu0 0
        %543 = vmatprep.subr.bf16.mxu0 0
        %544 = vmatpush1.bf16.msra.mxu0 0
        %545 = vmatprep.subr.bf16.mxu0 0
        %546 = vmatpush1.bf16.msra.mxu0 0
        %547 = vmatprep.subr.bf16.mxu0 0
        %548 = vmatpush1.bf16.msra.mxu0 0
        %549 = vmatprep.subr.bf16.mxu0 0
        %550 = vmatpush1.bf16.msra.mxu0 0
        %551 = vmatprep.subr.bf16.mxu0 0
        %552 = vmatpush1.bf16.msra.mxu0 0
        %553 = vmatprep.subr.bf16.mxu0 0
        %554 = vmatpush1.bf16.msra.mxu0 0
        %555 = vmatprep.subr.bf16.mxu0 0
        %556 = vmatpush1.bf16.msra.mxu0 0
        %557 = vmatprep.subr.bf16.mxu0 0
        %558 = vmatpush1.bf16.msra.mxu0 0
        %559 = vmatprep.subr.bf16.mxu0 0
        %560 = vmatpush1.bf16.msra.mxu0 0
        %561 = vmatprep.subr.bf16.mxu0 0
        %562 = vmatpush1.bf16.msra.mxu0 0
        %563 = vmatprep.subr.bf16.mxu0 0
        %564 = vmatpush1.bf16.msra.mxu0 0
        %565 = vmatprep.subr.bf16.mxu0 0
        %566 = vmatpush1.bf16.msra.mxu0 0
        %567 = vmatprep.subr.bf16.mxu0 0
        %568 = vmatpush1.bf16.msra.mxu0 0
        %569 = vmatprep.mubr.bf16.mxu0 0
        %570 = vmatmul.mubr.bf16.gmra.mrb[0].mxu0 %v531
        %v571 = vpop.f32.mrb[0].mxu0
        %v572 = vadd.f32 0.0, %v571
        %v573 = vpop.f32.mrb[0].mxu0
        %v574 = vpop.f32.mrb[0].mxu0
        %v575 = vadd.f32 0.0, %v574
        %v576 = vpop.f32.mrb[0].mxu0
        %577 = vdwg.mxu0
        %v578 = vpack.c.bf16 %v575, %v572
        %v579 = vld [vmem:[%s2] sm:$0xf]
        %v580 = vld [vmem:[%s2 + $0x4] sm:$0xf]
        %v581 = vld [vmem:[%s2 + $0x8] sm:$0xf]
        %v582 = vld [vmem:[%s2 + $0xc] sm:$0xf]
        %v583 = vld [vmem:[%s2 + $0x10] sm:$0xf]
        %v584 = vld [vmem:[%s2 + $0x14] sm:$0xf]
        %v585 = vld [vmem:[%s2 + $0x18] sm:$0xf]
        %v586 = vld [vmem:[%s2 + $0x1c] sm:$0xf]
        %v587 = vld [vmem:[%s2 + $0x20] sm:$0xf]
        %v588 = vld [vmem:[%s2 + $0x24] sm:$0xf]
        %v589 = vld [vmem:[%s2 + $0x28] sm:$0xf]
        %v590 = vld [vmem:[%s2 + $0x2c] sm:$0xf]
        %v591 = vld [vmem:[%s2 + $0x30] sm:$0xf]
        %v592 = vld [vmem:[%s2 + $0x34] sm:$0xf]
        %s593 = scalar_lea.vmem %s1, 8
        %v594 = vld [vmem:[%s593] sm:$0xf]
        %v595 = vld [vmem:[%s593 + $0x4] sm:$0x7]
        %v598 = vunpack.c.l.b16 %v594
        %v599 = vunpack.c.l.b16 %v595
        %v600 = vpack.c.b16 %v599, %v598
        %v602 = vsel %vm529, %v600, 0
        %604 = vmatprep.subr.bf16.mxu0 0
        %605 = vmatpush1.bf16.msra.mxu0 %v520
        %606 = vmatprep.subr.bf16.mxu0 0
        %607 = vmatpush1.bf16.msra.mxu0 %v535
        %608 = vmatprep.subr.bf16.mxu0 0
        %609 = vmatpush1.bf16.msra.mxu0 0
        %610 = vmatprep.subr.bf16.mxu0 0
        %611 = vmatpush1.bf16.msra.mxu0 0
        %612 = vmatprep.subr.bf16.mxu0 0
        %613 = vmatpush1.bf16.msra.mxu0 0
        %614 = vmatprep.subr.bf16.mxu0 0
        %615 = vmatpush1.bf16.msra.mxu0 0
        %616 = vmatprep.subr.bf16.mxu0 0
        %617 = vmatpush1.bf16.msra.mxu0 0
        %618 = vmatprep.subr.bf16.mxu0 0
        %619 = vmatpush1.bf16.msra.mxu0 0
        %620 = vmatprep.subr.bf16.mxu0 0
        %621 = vmatpush1.bf16.msra.mxu0 0
        %622 = vmatprep.subr.bf16.mxu0 0
        %623 = vmatpush1.bf16.msra.mxu0 0
        %624 = vmatprep.subr.bf16.mxu0 0
        %625 = vmatpush1.bf16.msra.mxu0 0
        %626 = vmatprep.subr.bf16.mxu0 0
        %627 = vmatpush1.bf16.msra.mxu0 0
        %628 = vmatprep.subr.bf16.mxu0 0
        %629 = vmatpush1.bf16.msra.mxu0 0
        %630 = vmatprep.subr.bf16.mxu0 0
        %631 = vmatpush1.bf16.msra.mxu0 0
        %632 = vmatprep.subr.bf16.mxu0 0
        %633 = vmatpush1.bf16.msra.mxu0 0
        %634 = vmatprep.subr.bf16.mxu0 0
        %635 = vmatpush1.bf16.msra.mxu0 0
        %636 = vmatprep.mubr.bf16.mxu0 0
        %637 = vmatmul.mubr.bf16.gmra.mrb[0].mxu0 %v602
        %v638 = vpop.f32.mrb[0].mxu0
        %v639 = vadd.f32 0.0, %v638
        %v640 = vpop.f32.mrb[0].mxu0
        %v641 = vpop.f32.mrb[0].mxu0
        %v642 = vadd.f32 0.0, %v641
        %v643 = vpop.f32.mrb[0].mxu0
        %644 = vdwg.mxu0
        %v645 = vpack.c.bf16 %v642, %v639
        %s646 = scalar_lea.vmem %s2, 56
        %v647 = vld [vmem:[%s646] sm:$0xf]
        %v648 = vld [vmem:[%s646 + $0x4] sm:$0xf]
        %v649 = vld [vmem:[%s646 + $0x8] sm:$0xf]
        %v650 = vld [vmem:[%s646 + $0xc] sm:$0xf]
        %v651 = vld [vmem:[%s646 + $0x10] sm:$0xf]
        %v652 = vld [vmem:[%s646 + $0x14] sm:$0xf]
        %v653 = vld [vmem:[%s646 + $0x18] sm:$0xf]
        %v654 = vld [vmem:[%s646 + $0x1c] sm:$0xf]
        %v655 = vld [vmem:[%s646 + $0x20] sm:$0xf]
        %v656 = vld [vmem:[%s646 + $0x24] sm:$0xf]
        %v657 = vld [vmem:[%s646 + $0x28] sm:$0xf]
        %v658 = vld [vmem:[%s646 + $0x2c] sm:$0xf]
        %v659 = vld [vmem:[%s646 + $0x30] sm:$0xf]
        %v660 = vld [vmem:[%s646 + $0x34] sm:$0xf]
        %v675 = vunpack.c.l.b16 %v647
        %v676 = vunpack.c.l.b16 %v648
        %v677 = vunpack.c.l.b16 %v649
        %v678 = vunpack.c.l.b16 %v650
        %v679 = vunpack.c.l.b16 %v651
        %v680 = vunpack.c.l.b16 %v652
        %v681 = vunpack.c.l.b16 %v653
        %v682 = vunpack.c.l.b16 %v654
        %v683 = vunpack.c.l.b16 %v655
        %v684 = vunpack.c.l.b16 %v656
        %v685 = vunpack.c.l.b16 %v657
        %v686 = vunpack.c.l.b16 %v658
        %v687 = vunpack.c.l.b16 %v659
        %v688 = vunpack.c.l.b16 %v660
        %v689 = vpack.c.b16 %v676, %v675
        %v690 = vpack.c.b16 %v678, %v677
        %v691 = vpack.c.b16 %v680, %v679
        %v692 = vpack.c.b16 %v682, %v681
        %v693 = vpack.c.b16 %v684, %v683
        %v694 = vpack.c.b16 %v686, %v685
        %v695 = vpack.c.b16 %v688, %v687
        %vm703 = vcmask 916480
        %v705 = vsel %vm703, %v645, 0
        %707 = vmatprep.subr.bf16.mxu0 0
        %708 = vmatpush1.bf16.msra.mxu0 %v689
        %709 = vmatprep.subr.bf16.mxu0 0
        %710 = vmatpush1.bf16.msra.mxu0 %v690
        %711 = vmatprep.subr.bf16.mxu0 0
        %712 = vmatpush1.bf16.msra.mxu0 %v691
        %713 = vmatprep.subr.bf16.mxu0 0
        %714 = vmatpush1.bf16.msra.mxu0 %v692
        %715 = vmatprep.subr.bf16.mxu0 0
        %716 = vmatpush1.bf16.msra.mxu0 %v693
        %717 = vmatprep.subr.bf16.mxu0 0
        %718 = vmatpush1.bf16.msra.mxu0 %v694
        %719 = vmatprep.subr.bf16.mxu0 0
        %720 = vmatpush1.bf16.msra.mxu0 %v695
        %721 = vmatprep.subr.bf16.mxu0 0
        %722 = vmatpush1.bf16.msra.mxu0 0
        %723 = vmatprep.subr.bf16.mxu0 0
        %724 = vmatpush1.bf16.msra.mxu0 0
        %725 = vmatprep.subr.bf16.mxu0 0
        %726 = vmatpush1.bf16.msra.mxu0 0
        %727 = vmatprep.subr.bf16.mxu0 0
        %728 = vmatpush1.bf16.msra.mxu0 0
        %729 = vmatprep.subr.bf16.mxu0 0
        %730 = vmatpush1.bf16.msra.mxu0 0
        %731 = vmatprep.subr.bf16.mxu0 0
        %732 = vmatpush1.bf16.msra.mxu0 0
        %733 = vmatprep.subr.bf16.mxu0 0
        %734 = vmatpush1.bf16.msra.mxu0 0
        %735 = vmatprep.subr.bf16.mxu0 0
        %736 = vmatpush1.bf16.msra.mxu0 0
        %737 = vmatprep.subr.bf16.mxu0 0
        %738 = vmatpush1.bf16.msra.mxu0 0
        %739 = vmatprep.mubr.bf16.mxu0 0
        %740 = vmatmul.mubr.bf16.gmra.mrb[0].mxu0 %v705
        %v741 = vpop.f32.mrb[0].mxu0
        %v742 = vadd.f32 0.0, %v741
        %v743 = vpop.f32.mrb[0].mxu0
        %v744 = vpop.f32.mrb[0].mxu0
        %v745 = vadd.f32 0.0, %v744
        %v746 = vpop.f32.mrb[0].mxu0
        %747 = vdwg.mxu0
        %v762 = vunpack.c.l.b16 %v579
        %v763 = vunpack.c.l.b16 %v580
        %v764 = vunpack.c.l.b16 %v581
        %v765 = vunpack.c.l.b16 %v582
        %v766 = vunpack.c.l.b16 %v583
        %v767 = vunpack.c.l.b16 %v584
        %v768 = vunpack.c.l.b16 %v585
        %v769 = vunpack.c.l.b16 %v586
        %v770 = vunpack.c.l.b16 %v587
        %v771 = vunpack.c.l.b16 %v588
        %v772 = vunpack.c.l.b16 %v589
        %v773 = vunpack.c.l.b16 %v590
        %v774 = vunpack.c.l.b16 %v591
        %v775 = vunpack.c.l.b16 %v592
        %v776 = vpack.c.b16 %v763, %v762
        %v777 = vpack.c.b16 %v765, %v764
        %v778 = vpack.c.b16 %v767, %v766
        %v779 = vpack.c.b16 %v769, %v768
        %v780 = vpack.c.b16 %v771, %v770
        %v781 = vpack.c.b16 %v773, %v772
        %v782 = vpack.c.b16 %v775, %v774
        %v791 = vsel %vm703, %v578, 0
        %793 = vmatprep.subr.bf16.mxu0 0
        %794 = vmatpush1.bf16.msra.mxu0 %v776
        %795 = vmatprep.subr.bf16.mxu0 0
        %796 = vmatpush1.bf16.msra.mxu0 %v777
        %797 = vmatprep.subr.bf16.mxu0 0
        %798 = vmatpush1.bf16.msra.mxu0 %v778
        %799 = vmatprep.subr.bf16.mxu0 0
        %800 = vmatpush1.bf16.msra.mxu0 %v779
        %801 = vmatprep.subr.bf16.mxu0 0
        %802 = vmatpush1.bf16.msra.mxu0 %v780
        %803 = vmatprep.subr.bf16.mxu0 0
        %804 = vmatpush1.bf16.msra.mxu0 %v781
        %805 = vmatprep.subr.bf16.mxu0 0
        %806 = vmatpush1.bf16.msra.mxu0 %v782
        %807 = vmatprep.subr.bf16.mxu0 0
        %808 = vmatpush1.bf16.msra.mxu0 0
        %809 = vmatprep.subr.bf16.mxu0 0
        %810 = vmatpush1.bf16.msra.mxu0 0
        %811 = vmatprep.subr.bf16.mxu0 0
        %812 = vmatpush1.bf16.msra.mxu0 0
        %813 = vmatprep.subr.bf16.mxu0 0
        %814 = vmatpush1.bf16.msra.mxu0 0
        %815 = vmatprep.subr.bf16.mxu0 0
        %816 = vmatpush1.bf16.msra.mxu0 0
        %817 = vmatprep.subr.bf16.mxu0 0
        %818 = vmatpush1.bf16.msra.mxu0 0
        %819 = vmatprep.subr.bf16.mxu0 0
        %820 = vmatpush1.bf16.msra.mxu0 0
        %821 = vmatprep.subr.bf16.mxu0 0
        %822 = vmatpush1.bf16.msra.mxu0 0
        %823 = vmatprep.subr.bf16.mxu0 0
        %824 = vmatpush1.bf16.msra.mxu0 0
        %825 = vmatprep.mubr.bf16.mxu0 0
        %826 = vmatmul.mubr.bf16.gmra.mrb[0].mxu0 %v791
        %v827 = vpop.f32.mrb[0].mxu0
        %v828 = vadd.f32 %v742, %v827
        %v829 = vpop.f32.mrb[0].mxu0
        %v830 = vpop.f32.mrb[0].mxu0
        %v831 = vadd.f32 %v745, %v830
        %v832 = vpop.f32.mrb[0].mxu0
        %833 = vdwg.mxu0
        %s834 = scalar_lea.vmem %s1, 16
        %v835 = vld [vmem:[%s834] sm:$0xf]
        %v836 = vld [vmem:[%s834 + $0x4] sm:$0x7]
        %v839 = vunpack.c.l.b16 %v835
        %v840 = vunpack.c.l.b16 %v836
        %v841 = vpack.c.b16 %v840, %v839
        %v843 = vsel %vm529, %v841, 0
        %845 = vmatprep.subr.bf16.mxu0 0
        %846 = vmatpush1.bf16.msra.mxu0 %v520
        %847 = vmatprep.subr.bf16.mxu0 0
        %848 = vmatpush1.bf16.msra.mxu0 %v535
        %849 = vmatprep.subr.bf16.mxu0 0
        %850 = vmatpush1.bf16.msra.mxu0 0
        %851 = vmatprep.subr.bf16.mxu0 0
        %852 = vmatpush1.bf16.msra.mxu0 0
        %853 = vmatprep.subr.bf16.mxu0 0
        %854 = vmatpush1.bf16.msra.mxu0 0
        %855 = vmatprep.subr.bf16.mxu0 0
        %856 = vmatpush1.bf16.msra.mxu0 0
        %857 = vmatprep.subr.bf16.mxu0 0
        %858 = vmatpush1.bf16.msra.mxu0 0
        %859 = vmatprep.subr.bf16.mxu0 0
        %860 = vmatpush1.bf16.msra.mxu0 0
        %861 = vmatprep.subr.bf16.mxu0 0
        %862 = vmatpush1.bf16.msra.mxu0 0
        %863 = vmatprep.subr.bf16.mxu0 0
        %864 = vmatpush1.bf16.msra.mxu0 0
        %865 = vmatprep.subr.bf16.mxu0 0
        %866 = vmatpush1.bf16.msra.mxu0 0
        %867 = vmatprep.subr.bf16.mxu0 0
        %868 = vmatpush1.bf16.msra.mxu0 0
        %869 = vmatprep.subr.bf16.mxu0 0
        %870 = vmatpush1.bf16.msra.mxu0 0
        %871 = vmatprep.subr.bf16.mxu0 0
        %872 = vmatpush1.bf16.msra.mxu0 0
        %873 = vmatprep.subr.bf16.mxu0 0
        %874 = vmatpush1.bf16.msra.mxu0 0
        %875 = vmatprep.subr.bf16.mxu0 0
        %876 = vmatpush1.bf16.msra.mxu0 0
        %877 = vmatprep.mubr.bf16.mxu0 0
        %878 = vmatmul.mubr.bf16.gmra.mrb[0].mxu0 %v843
        %v879 = vpop.f32.mrb[0].mxu0
        %v880 = vadd.f32 0.0, %v879
        %v881 = vpop.f32.mrb[0].mxu0
        %v882 = vpop.f32.mrb[0].mxu0
        %v883 = vadd.f32 0.0, %v882
        %v884 = vpop.f32.mrb[0].mxu0
        %885 = vdwg.mxu0
        %v886 = vpack.c.bf16 %v883, %v880
        %s887 = scalar_lea.vmem %s2, 112
        %v888 = vld [vmem:[%s887] sm:$0xf]
        %v889 = vld [vmem:[%s887 + $0x4] sm:$0xf]
        %v890 = vld [vmem:[%s887 + $0x8] sm:$0xf]
        %v891 = vld [vmem:[%s887 + $0xc] sm:$0xf]
        %v892 = vld [vmem:[%s887 + $0x10] sm:$0xf]
        %v893 = vld [vmem:[%s887 + $0x14] sm:$0xf]
        %v894 = vld [vmem:[%s887 + $0x18] sm:$0xf]
        %v895 = vld [vmem:[%s887 + $0x1c] sm:$0xf]
        %v896 = vld [vmem:[%s887 + $0x20] sm:$0xf]
        %v897 = vld [vmem:[%s887 + $0x24] sm:$0xf]
        %v898 = vld [vmem:[%s887 + $0x28] sm:$0xf]
        %v899 = vld [vmem:[%s887 + $0x2c] sm:$0xf]
        %v900 = vld [vmem:[%s887 + $0x30] sm:$0xf]
        %v901 = vld [vmem:[%s887 + $0x34] sm:$0xf]
        %v916 = vunpack.c.l.b16 %v888
        %v917 = vunpack.c.l.b16 %v889
        %v918 = vunpack.c.l.b16 %v890
        %v919 = vunpack.c.l.b16 %v891
        %v920 = vunpack.c.l.b16 %v892
        %v921 = vunpack.c.l.b16 %v893
        %v922 = vunpack.c.l.b16 %v894
        %v923 = vunpack.c.l.b16 %v895
        %v924 = vunpack.c.l.b16 %v896
        %v925 = vunpack.c.l.b16 %v897
        %v926 = vunpack.c.l.b16 %v898
        %v927 = vunpack.c.l.b16 %v899
        %v928 = vunpack.c.l.b16 %v900
        %v929 = vunpack.c.l.b16 %v901
        %v930 = vpack.c.b16 %v917, %v916
        %v931 = vpack.c.b16 %v919, %v918
        %v932 = vpack.c.b16 %v921, %v920
        %v933 = vpack.c.b16 %v923, %v922
        %v934 = vpack.c.b16 %v925, %v924
        %v935 = vpack.c.b16 %v927, %v926
        %v936 = vpack.c.b16 %v929, %v928
        %v945 = vsel %vm703, %v886, 0
        %947 = vmatprep.subr.bf16.mxu0 0
        %948 = vmatpush1.bf16.msra.mxu0 %v930
        %949 = vmatprep.subr.bf16.mxu0 0
        %950 = vmatpush1.bf16.msra.mxu0 %v931
        %951 = vmatprep.subr.bf16.mxu0 0
        %952 = vmatpush1.bf16.msra.mxu0 %v932
        %953 = vmatprep.subr.bf16.mxu0 0
        %954 = vmatpush1.bf16.msra.mxu0 %v933
        %955 = vmatprep.subr.bf16.mxu0 0
        %956 = vmatpush1.bf16.msra.mxu0 %v934
        %957 = vmatprep.subr.bf16.mxu0 0
        %958 = vmatpush1.bf16.msra.mxu0 %v935
        %959 = vmatprep.subr.bf16.mxu0 0
        %960 = vmatpush1.bf16.msra.mxu0 %v936
        %961 = vmatprep.subr.bf16.mxu0 0
        %962 = vmatpush1.bf16.msra.mxu0 0
        %963 = vmatprep.subr.bf16.mxu0 0
        %964 = vmatpush1.bf16.msra.mxu0 0
        %965 = vmatprep.subr.bf16.mxu0 0
        %966 = vmatpush1.bf16.msra.mxu0 0
        %967 = vmatprep.subr.bf16.mxu0 0
        %968 = vmatpush1.bf16.msra.mxu0 0
        %969 = vmatprep.subr.bf16.mxu0 0
        %970 = vmatpush1.bf16.msra.mxu0 0
        %971 = vmatprep.subr.bf16.mxu0 0
        %972 = vmatpush1.bf16.msra.mxu0 0
        %973 = vmatprep.subr.bf16.mxu0 0
        %974 = vmatpush1.bf16.msra.mxu0 0
        %975 = vmatprep.subr.bf16.mxu0 0
        %976 = vmatpush1.bf16.msra.mxu0 0
        %977 = vmatprep.subr.bf16.mxu0 0
        %978 = vmatpush1.bf16.msra.mxu0 0
        %979 = vmatprep.mubr.bf16.mxu0 0
        %980 = vmatmul.mubr.bf16.gmra.mrb[0].mxu0 %v945
        %v981 = vpop.f32.mrb[0].mxu0
        %v982 = vadd.f32 0.0, %v981
        %v983 = vpop.f32.mrb[0].mxu0
        %v984 = vpop.f32.mrb[0].mxu0
        %v985 = vadd.f32 0.0, %v984
        %v986 = vpop.f32.mrb[0].mxu0
        %987 = vdwg.mxu0
        %v988 = vadd.f32 %v828, %v982
        %v989 = vadd.f32 %v831, %v985
        %v990 = vld [vmem:[%s3] sm:$0x1]
        %v992 = vlaneseq
        %v993 = vshrl.u32 %v992, 7
        %v994 = vsub.s32 0, %v993
        %v995 = vrot.slane %v990, %v994
        %v997 = vadd.f32 %v988, %v995
        %v998 = vadd.f32 %v989, %v995
        %vm999 = vcmp.ge.f32.partialorder %v997, 0.0
        %vm1000 = vcmp.ge.f32.partialorder %v998, 0.0
        %v1001 = vmul.f32 %v997, 0.01
        %v1002 = vmul.f32 %v998, 0.01
        %v1003 = vsel %vm999, %v997, %v1001
        %v1004 = vsel %vm1000, %v998, %v1002
        %v1005 = vpack.c.bf16 %v1004, %v1003
        %v1006 = vld [vmem:[%s4] sm:$0xf]
        %vm1007 = vcmask 113664
        %v1009 = vsel %vm1007, %v1006, 0
        %vm1011 = vcmask 1046528
        %v1013 = vsel %vm1011, %v1005, 0
        %1015 = vmatprep.subr.bf16.mxu0 0
        %1016 = vmatpush1.bf16.msra.mxu0 %v1013
        %1017 = vmatprep.subr.bf16.mxu0 0
        %1018 = vmatpush1.bf16.msra.mxu0 0
        %1019 = vmatprep.subr.bf16.mxu0 0
        %1020 = vmatpush1.bf16.msra.mxu0 0
        %1021 = vmatprep.subr.bf16.mxu0 0
        %1022 = vmatpush1.bf16.msra.mxu0 0
        %1023 = vmatprep.subr.bf16.mxu0 0
        %1024 = vmatpush1.bf16.msra.mxu0 0
        %1025 = vmatprep.subr.bf16.mxu0 0
        %1026 = vmatpush1.bf16.msra.mxu0 0
        %1027 = vmatprep.subr.bf16.mxu0 0
        %1028 = vmatpush1.bf16.msra.mxu0 0
        %1029 = vmatprep.subr.bf16.mxu0 0
        %1030 = vmatpush1.bf16.msra.mxu0 0
        %1031 = vmatprep.subr.bf16.mxu0 0
        %1032 = vmatpush1.bf16.msra.mxu0 0
        %1033 = vmatprep.subr.bf16.mxu0 0
        %1034 = vmatpush1.bf16.msra.mxu0 0
        %1035 = vmatprep.subr.bf16.mxu0 0
        %1036 = vmatpush1.bf16.msra.mxu0 0
        %1037 = vmatprep.subr.bf16.mxu0 0
        %1038 = vmatpush1.bf16.msra.mxu0 0
        %1039 = vmatprep.subr.bf16.mxu0 0
        %1040 = vmatpush1.bf16.msra.mxu0 0
        %1041 = vmatprep.subr.bf16.mxu0 0
        %1042 = vmatpush1.bf16.msra.mxu0 0
        %1043 = vmatprep.subr.bf16.mxu0 0
        %1044 = vmatpush1.bf16.msra.mxu0 0
        %1045 = vmatprep.subr.bf16.mxu0 0
        %1046 = vmatpush1.bf16.msra.mxu0 0
        %1047 = vmatprep.mubr.bf16.mxu0 0
        %1048 = vmatmul.mubr.bf16.gmra.mrb[0].mxu0 %v1009
        %v1049 = vpop.f32.mrb[0].mxu0
        %v1050 = vadd.f32 0.0, %v1049
        %v1051 = vpop.f32.mrb[0].mxu0
        %v1052 = vpop.f32.mrb[0].mxu0
        %v1053 = vpop.f32.mrb[0].mxu0
        %1054 = vdwg.mxu0
        %v1055 = vpack.c.bf16 %v1050, %v1050
        %v1056 = vld [vmem:[%s5] sm:$0xf]
        %v1057 = vld [vmem:[%s5 + $0x4] sm:$0xf]
        %v1058 = vld [vmem:[%s5 + $0x8] sm:$0xf]
        %v1059 = vld [vmem:[%s5 + $0xc] sm:$0xf]
        %v1060 = vld [vmem:[%s5 + $0x10] sm:$0xf]
        %v1061 = vld [vmem:[%s5 + $0x14] sm:$0xf]
        %v1062 = vld [vmem:[%s5 + $0x18] sm:$0xf]
        %s1063 = scalar_lea.vmem %s4, 4
        %v1064 = vld [vmem:[%s1063] sm:$0xf]
        %v1066 = vsel %vm1007, %v1064, 0
        %1068 = vmatprep.subr.bf16.mxu0 0
        %1069 = vmatpush1.bf16.msra.mxu0 %v1013
        %1070 = vmatprep.subr.bf16.mxu0 0
        %1071 = vmatpush1.bf16.msra.mxu0 0
        %1072 = vmatprep.subr.bf16.mxu0 0
        %1073 = vmatpush1.bf16.msra.mxu0 0
        %1074 = vmatprep.subr.bf16.mxu0 0
        %1075 = vmatpush1.bf16.msra.mxu0 0
        %1076 = vmatprep.subr.bf16.mxu0 0
        %1077 = vmatpush1.bf16.msra.mxu0 0
        %1078 = vmatprep.subr.bf16.mxu0 0
        %1079 = vmatpush1.bf16.msra.mxu0 0
        %1080 = vmatprep.subr.bf16.mxu0 0
        %1081 = vmatpush1.bf16.msra.mxu0 0
        %1082 = vmatprep.subr.bf16.mxu0 0
        %1083 = vmatpush1.bf16.msra.mxu0 0
        %1084 = vmatprep.subr.bf16.mxu0 0
        %1085 = vmatpush1.bf16.msra.mxu0 0
        %1086 = vmatprep.subr.bf16.mxu0 0
        %1087 = vmatpush1.bf16.msra.mxu0 0
        %1088 = vmatprep.subr.bf16.mxu0 0
        %1089 = vmatpush1.bf16.msra.mxu0 0
        %1090 = vmatprep.subr.bf16.mxu0 0
        %1091 = vmatpush1.bf16.msra.mxu0 0
        %1092 = vmatprep.subr.bf16.mxu0 0
        %1093 = vmatpush1.bf16.msra.mxu0 0
        %1094 = vmatprep.subr.bf16.mxu0 0
        %1095 = vmatpush1.bf16.msra.mxu0 0
        %1096 = vmatprep.subr.bf16.mxu0 0
        %1097 = vmatpush1.bf16.msra.mxu0 0
        %1098 = vmatprep.subr.bf16.mxu0 0
        %1099 = vmatpush1.bf16.msra.mxu0 0
        %1100 = vmatprep.mubr.bf16.mxu0 0
        %1101 = vmatmul.mubr.bf16.gmra.mrb[0].mxu0 %v1066
        %v1102 = vpop.f32.mrb[0].mxu0
        %v1103 = vadd.f32 0.0, %v1102
        %v1104 = vpop.f32.mrb[0].mxu0
        %v1105 = vpop.f32.mrb[0].mxu0
        %v1106 = vpop.f32.mrb[0].mxu0
        %1107 = vdwg.mxu0
        %v1108 = vpack.c.bf16 %v1103, %v1103
        %s1109 = scalar_lea.vmem %s5, 28
        %v1110 = vld [vmem:[%s1109] sm:$0xf]
        %v1111 = vld [vmem:[%s1109 + $0x4] sm:$0xf]
        %v1112 = vld [vmem:[%s1109 + $0x8] sm:$0xf]
        %v1113 = vld [vmem:[%s1109 + $0xc] sm:$0xf]
        %v1114 = vld [vmem:[%s1109 + $0x10] sm:$0xf]
        %v1115 = vld [vmem:[%s1109 + $0x14] sm:$0xf]
        %v1116 = vld [vmem:[%s1109 + $0x18] sm:$0xf]
        %v1124 = vunpack.c.l.b16 %v1110
        %v1125 = vunpack.c.l.b16 %v1111
        %v1126 = vunpack.c.l.b16 %v1112
        %v1127 = vunpack.c.l.b16 %v1113
        %v1128 = vunpack.c.l.b16 %v1114
        %v1129 = vunpack.c.l.b16 %v1115
        %v1130 = vunpack.c.l.b16 %v1116
        %v1131 = vpack.c.b16 %v1125, %v1124
        %v1132 = vpack.c.b16 %v1127, %v1126
        %v1133 = vpack.c.b16 %v1129, %v1128
        %v1134 = vpack.c.b16 %v1130, %v1130
        %vm1138 = vcmask 457728
        %v1140 = vsel %vm1138, %v1108, 0
        %vm1142 = vcmask 1043456
        %v1144 = vsel %vm1142, %v1134, 0
        %1146 = vmatprep.subr.bf16.mxu0 0
        %1147 = vmatpush1.bf16.msra.mxu0 %v1131
        %1148 = vmatprep.subr.bf16.mxu0 0
        %1149 = vmatpush1.bf16.msra.mxu0 %v1132
        %1150 = vmatprep.subr.bf16.mxu0 0
        %1151 = vmatpush1.bf16.msra.mxu0 %v1133
        %1152 = vmatprep.subr.bf16.mxu0 0
        %1153 = vmatpush1.bf16.msra.mxu0 %v1144
        %1154 = vmatprep.subr.bf16.mxu0 0
        %1155 = vmatpush1.bf16.msra.mxu0 0
        %1156 = vmatprep.subr.bf16.mxu0 0
        %1157 = vmatpush1.bf16.msra.mxu0 0
        %1158 = vmatprep.subr.bf16.mxu0 0
        %1159 = vmatpush1.bf16.msra.mxu0 0
        %1160 = vmatprep.subr.bf16.mxu0 0
        %1161 = vmatpush1.bf16.msra.mxu0 0
        %1162 = vmatprep.subr.bf16.mxu0 0
        %1163 = vmatpush1.bf16.msra.mxu0 0
        %1164 = vmatprep.subr.bf16.mxu0 0
        %1165 = vmatpush1.bf16.msra.mxu0 0
        %1166 = vmatprep.subr.bf16.mxu0 0
        %1167 = vmatpush1.bf16.msra.mxu0 0
        %1168 = vmatprep.subr.bf16.mxu0 0
        %1169 = vmatpush1.bf16.msra.mxu0 0
        %1170 = vmatprep.subr.bf16.mxu0 0
        %1171 = vmatpush1.bf16.msra.mxu0 0
        %1172 = vmatprep.subr.bf16.mxu0 0
        %1173 = vmatpush1.bf16.msra.mxu0 0
        %1174 = vmatprep.subr.bf16.mxu0 0
        %1175 = vmatpush1.bf16.msra.mxu0 0
        %1176 = vmatprep.subr.bf16.mxu0 0
        %1177 = vmatpush1.bf16.msra.mxu0 0
        %1178 = vmatprep.mubr.bf16.mxu0 0
        %1179 = vmatmul.mubr.bf16.gmra.mrb[0].mxu0 %v1140
        %v1180 = vpop.f32.mrb[0].mxu0
        %v1181 = vadd.f32 0.0, %v1180
        %v1182 = vpop.f32.mrb[0].mxu0
        %v1183 = vpop.f32.mrb[0].mxu0
        %v1184 = vpop.f32.mrb[0].mxu0
        %1185 = vdwg.mxu0
        %v1193 = vunpack.c.l.b16 %v1056
        %v1194 = vunpack.c.l.b16 %v1057
        %v1195 = vunpack.c.l.b16 %v1058
        %v1196 = vunpack.c.l.b16 %v1059
        %v1197 = vunpack.c.l.b16 %v1060
        %v1198 = vunpack.c.l.b16 %v1061
        %v1199 = vunpack.c.l.b16 %v1062
        %v1200 = vpack.c.b16 %v1194, %v1193
        %v1201 = vpack.c.b16 %v1196, %v1195
        %v1202 = vpack.c.b16 %v1198, %v1197
        %v1203 = vpack.c.b16 %v1199, %v1199
        %v1208 = vsel %vm1138, %v1055, 0
        %v1211 = vsel %vm1142, %v1203, 0
        %1213 = vmatprep.subr.bf16.mxu0 0
        %1214 = vmatpush1.bf16.msra.mxu0 %v1200
        %1215 = vmatprep.subr.bf16.mxu0 0
        %1216 = vmatpush1.bf16.msra.mxu0 %v1201
        %1217 = vmatprep.subr.bf16.mxu0 0
        %1218 = vmatpush1.bf16.msra.mxu0 %v1202
        %1219 = vmatprep.subr.bf16.mxu0 0
        %1220 = vmatpush1.bf16.msra.mxu0 %v1211
        %1221 = vmatprep.subr.bf16.mxu0 0
        %1222 = vmatpush1.bf16.msra.mxu0 0
        %1223 = vmatprep.subr.bf16.mxu0 0
        %1224 = vmatpush1.bf16.msra.mxu0 0
        %1225 = vmatprep.subr.bf16.mxu0 0
        %1226 = vmatpush1.bf16.msra.mxu0 0
        %1227 = vmatprep.subr.bf16.mxu0 0
        %1228 = vmatpush1.bf16.msra.mxu0 0
        %1229 = vmatprep.subr.bf16.mxu0 0
        %1230 = vmatpush1.bf16.msra.mxu0 0
        %1231 = vmatprep.subr.bf16.mxu0 0
        %1232 = vmatpush1.bf16.msra.mxu0 0
        %1233 = vmatprep.subr.bf16.mxu0 0
        %1234 = vmatpush1.bf16.msra.mxu0 0
        %1235 = vmatprep.subr.bf16.mxu0 0
        %1236 = vmatpush1.bf16.msra.mxu0 0
        %1237 = vmatprep.subr.bf16.mxu0 0
        %1238 = vmatpush1.bf16.msra.mxu0 0
        %1239 = vmatprep.subr.bf16.mxu0 0
        %1240 = vmatpush1.bf16.msra.mxu0 0
        %1241 = vmatprep.subr.bf16.mxu0 0
        %1242 = vmatpush1.bf16.msra.mxu0 0
        %1243 = vmatprep.subr.bf16.mxu0 0
        %1244 = vmatpush1.bf16.msra.mxu0 0
        %1245 = vmatprep.mubr.bf16.mxu0 0
        %1246 = vmatmul.mubr.bf16.gmra.mrb[0].mxu0 %v1208
        %v1247 = vpop.f32.mrb[0].mxu0
        %v1248 = vadd.f32 %v1181, %v1247
        %v1249 = vpop.f32.mrb[0].mxu0
        %v1250 = vpop.f32.mrb[0].mxu0
        %v1251 = vpop.f32.mrb[0].mxu0
        %1252 = vdwg.mxu0
        %s1253 = scalar_lea.vmem %s4, 8
        %v1254 = vld [vmem:[%s1253] sm:$0xf]
        %v1256 = vsel %vm1007, %v1254, 0
        %1258 = vmatprep.subr.bf16.mxu0 0
        %1259 = vmatpush1.bf16.msra.mxu0 %v1013
        %1260 = vmatprep.subr.bf16.mxu0 0
        %1261 = vmatpush1.bf16.msra.mxu0 0
        %1262 = vmatprep.subr.bf16.mxu0 0
        %1263 = vmatpush1.bf16.msra.mxu0 0
        %1264 = vmatprep.subr.bf16.mxu0 0
        %1265 = vmatpush1.bf16.msra.mxu0 0
        %1266 = vmatprep.subr.bf16.mxu0 0
        %1267 = vmatpush1.bf16.msra.mxu0 0
        %1268 = vmatprep.subr.bf16.mxu0 0
        %1269 = vmatpush1.bf16.msra.mxu0 0
        %1270 = vmatprep.subr.bf16.mxu0 0
        %1271 = vmatpush1.bf16.msra.mxu0 0
        %1272 = vmatprep.subr.bf16.mxu0 0
        %1273 = vmatpush1.bf16.msra.mxu0 0
        %1274 = vmatprep.subr.bf16.mxu0 0
        %1275 = vmatpush1.bf16.msra.mxu0 0
        %1276 = vmatprep.subr.bf16.mxu0 0
        %1277 = vmatpush1.bf16.msra.mxu0 0
        %1278 = vmatprep.subr.bf16.mxu0 0
        %1279 = vmatpush1.bf16.msra.mxu0 0
        %1280 = vmatprep.subr.bf16.mxu0 0
        %1281 = vmatpush1.bf16.msra.mxu0 0
        %1282 = vmatprep.subr.bf16.mxu0 0
        %1283 = vmatpush1.bf16.msra.mxu0 0
        %1284 = vmatprep.subr.bf16.mxu0 0
        %1285 = vmatpush1.bf16.msra.mxu0 0
        %1286 = vmatprep.subr.bf16.mxu0 0
        %1287 = vmatpush1.bf16.msra.mxu0 0
        %1288 = vmatprep.subr.bf16.mxu0 0
        %1289 = vmatpush1.bf16.msra.mxu0 0
        %1290 = vmatprep.mubr.bf16.mxu0 0
        %1291 = vmatmul.mubr.bf16.gmra.mrb[0].mxu0 %v1256
        %v1292 = vpop.f32.mrb[0].mxu0
        %v1293 = vadd.f32 0.0, %v1292
        %v1294 = vpop.f32.mrb[0].mxu0
        %v1295 = vpop.f32.mrb[0].mxu0
        %v1296 = vpop.f32.mrb[0].mxu0
        %1297 = vdwg.mxu0
        %v1298 = vpack.c.bf16 %v1293, %v1293
        %s1299 = scalar_lea.vmem %s5, 56
        %v1300 = vld [vmem:[%s1299] sm:$0xf]
        %v1301 = vld [vmem:[%s1299 + $0x4] sm:$0xf]
        %v1302 = vld [vmem:[%s1299 + $0x8] sm:$0xf]
        %v1303 = vld [vmem:[%s1299 + $0xc] sm:$0xf]
        %v1304 = vld [vmem:[%s1299 + $0x10] sm:$0xf]
        %v1305 = vld [vmem:[%s1299 + $0x14] sm:$0xf]
        %v1306 = vld [vmem:[%s1299 + $0x18] sm:$0xf]
        %v1314 = vunpack.c.l.b16 %v1300
        %v1315 = vunpack.c.l.b16 %v1301
        %v1316 = vunpack.c.l.b16 %v1302
        %v1317 = vunpack.c.l.b16 %v1303
        %v1318 = vunpack.c.l.b16 %v1304
        %v1319 = vunpack.c.l.b16 %v1305
        %v1320 = vunpack.c.l.b16 %v1306
        %v1321 = vpack.c.b16 %v1315, %v1314
        %v1322 = vpack.c.b16 %v1317, %v1316
        %v1323 = vpack.c.b16 %v1319, %v1318
        %v1324 = vpack.c.b16 %v1320, %v1320
        %v1329 = vsel %vm1138, %v1298, 0
        %v1332 = vsel %vm1142, %v1324, 0
        %1334 = vmatprep.subr.bf16.mxu0 0
        %1335 = vmatpush1.bf16.msra.mxu0 %v1321
        %1336 = vmatprep.subr.bf16.mxu0 0
        %1337 = vmatpush1.bf16.msra.mxu0 %v1322
        %1338 = vmatprep.subr.bf16.mxu0 0
        %1339 = vmatpush1.bf16.msra.mxu0 %v1323
        %1340 = vmatprep.subr.bf16.mxu0 0
        %1341 = vmatpush1.bf16.msra.mxu0 %v1332
        %1342 = vmatprep.subr.bf16.mxu0 0
        %1343 = vmatpush1.bf16.msra.mxu0 0
        %1344 = vmatprep.subr.bf16.mxu0 0
        %1345 = vmatpush1.bf16.msra.mxu0 0
        %1346 = vmatprep.subr.bf16.mxu0 0
        %1347 = vmatpush1.bf16.msra.mxu0 0
        %1348 = vmatprep.subr.bf16.mxu0 0
        %1349 = vmatpush1.bf16.msra.mxu0 0
        %1350 = vmatprep.subr.bf16.mxu0 0
        %1351 = vmatpush1.bf16.msra.mxu0 0
        %1352 = vmatprep.subr.bf16.mxu0 0
        %1353 = vmatpush1.bf16.msra.mxu0 0
        %1354 = vmatprep.subr.bf16.mxu0 0
        %1355 = vmatpush1.bf16.msra.mxu0 0
        %1356 = vmatprep.subr.bf16.mxu0 0
        %1357 = vmatpush1.bf16.msra.mxu0 0
        %1358 = vmatprep.subr.bf16.mxu0 0
        %1359 = vmatpush1.bf16.msra.mxu0 0
        %1360 = vmatprep.subr.bf16.mxu0 0
        %1361 = vmatpush1.bf16.msra.mxu0 0
        %1362 = vmatprep.subr.bf16.mxu0 0
        %1363 = vmatpush1.bf16.msra.mxu0 0
        %1364 = vmatprep.subr.bf16.mxu0 0
        %1365 = vmatpush1.bf16.msra.mxu0 0
        %1366 = vmatprep.mubr.bf16.mxu0 0
        %1367 = vmatmul.mubr.bf16.gmra.mrb[0].mxu0 %v1329
        %v1368 = vpop.f32.mrb[0].mxu0
        %v1369 = vadd.f32 0.0, %v1368
        %v1370 = vpop.f32.mrb[0].mxu0
        %v1371 = vpop.f32.mrb[0].mxu0
        %v1372 = vpop.f32.mrb[0].mxu0
        %1373 = vdwg.mxu0
        %v1374 = vadd.f32 %v1248, %v1369
        %v1375 = vld [vmem:[%s6] sm:$0x1]
        %v1377 = vlaneseq
        %v1378 = vshrl.u32 %v1377, 7
        %v1379 = vsub.s32 0, %v1378
        %v1380 = vrot.slane %v1375, %v1379
        %v1382 = vadd.f32 %v1374, %v1380
        %vm1383 = vcmp.ge.f32.partialorder %v1382, 0.0
        %v1384 = vmul.f32 %v1382, 0.01
        %v1385 = vsel %vm1383, %v1382, %v1384
        %v1386 = vpack.c.bf16 %v1385, %v1385
        %v1387 = vld [vmem:[%s7] sm:$0x3]
        %vm1388 = vcmask 56320
        %v1390 = vsel %vm1388, %v1387, 0
        %vm1392 = vcmask 1042432
        %v1393 = vsel %vm1392, 4294967295, 65535
        %v1394 = vsel %vm1142, %v1393, 0
        %v1396 = vand.u32 %v1386, %v1394
        %1398 = vmatprep.subr.bf16.mxu0 0
        %1399 = vmatpush1.bf16.msra.mxu0 %v1396
        %1400 = vmatprep.subr.bf16.mxu0 0
        %1401 = vmatpush1.bf16.msra.mxu0 0
        %1402 = vmatprep.subr.bf16.mxu0 0
        %1403 = vmatpush1.bf16.msra.mxu0 0
        %1404 = vmatprep.subr.bf16.mxu0 0
        %1405 = vmatpush1.bf16.msra.mxu0 0
        %1406 = vmatprep.subr.bf16.mxu0 0
        %1407 = vmatpush1.bf16.msra.mxu0 0
        %1408 = vmatprep.subr.bf16.mxu0 0
        %1409 = vmatpush1.bf16.msra.mxu0 0
        %1410 = vmatprep.subr.bf16.mxu0 0
        %1411 = vmatpush1.bf16.msra.mxu0 0
        %1412 = vmatprep.subr.bf16.mxu0 0
        %1413 = vmatpush1.bf16.msra.mxu0 0
        %1414 = vmatprep.subr.bf16.mxu0 0
        %1415 = vmatpush1.bf16.msra.mxu0 0
        %1416 = vmatprep.subr.bf16.mxu0 0
        %1417 = vmatpush1.bf16.msra.mxu0 0
        %1418 = vmatprep.subr.bf16.mxu0 0
        %1419 = vmatpush1.bf16.msra.mxu0 0
        %1420 = vmatprep.subr.bf16.mxu0 0
        %1421 = vmatpush1.bf16.msra.mxu0 0
        %1422 = vmatprep.subr.bf16.mxu0 0
        %1423 = vmatpush1.bf16.msra.mxu0 0
        %1424 = vmatprep.subr.bf16.mxu0 0
        %1425 = vmatpush1.bf16.msra.mxu0 0
        %1426 = vmatprep.subr.bf16.mxu0 0
        %1427 = vmatpush1.bf16.msra.mxu0 0
        %1428 = vmatprep.subr.bf16.mxu0 0
        %1429 = vmatpush1.bf16.msra.mxu0 0
        %1430 = vmatprep.mubr.bf16.mxu0 0
        %1431 = vmatmul.mubr.bf16.gmra.mrb[0].mxu0 %v1390
        %v1432 = vpop.f32.mrb[0].mxu0
        %v1433 = vadd.f32 0.0, %v1432
        %v1434 = vpop.f32.mrb[0].mxu0
        %v1435 = vpop.f32.mrb[0].mxu0
        %v1436 = vpop.f32.mrb[0].mxu0
        %1437 = vdwg.mxu0
        %v1438 = vpack.c.bf16 %v1433, %v1433
        %v1439 = vld [vmem:[%s8] sm:$0xf]
        %v1440 = vld [vmem:[%s8 + $0x4] sm:$0xf]
        %v1441 = vld [vmem:[%s8 + $0x8] sm:$0xf]
        %v1442 = vld [vmem:[%s8 + $0xc] sm:$0xf]
        %v1443 = vld [vmem:[%s8 + $0x10] sm:$0xf]
        %v1444 = vld [vmem:[%s8 + $0x14] sm:$0xf]
        %v1445 = vld [vmem:[%s8 + $0x18] sm:$0xf]
        %s1446 = scalar_lea.vmem %s7, 2
        %v1447 = vld [vmem:[%s1446] sm:$0x3]
        %v1449 = vsel %vm1388, %v1447, 0
        %1451 = vmatprep.subr.bf16.mxu0 0
        %1452 = vmatpush1.bf16.msra.mxu0 %v1396
        %1453 = vmatprep.subr.bf16.mxu0 0
        %1454 = vmatpush1.bf16.msra.mxu0 0
        %1455 = vmatprep.subr.bf16.mxu0 0
        %1456 = vmatpush1.bf16.msra.mxu0 0
        %1457 = vmatprep.subr.bf16.mxu0 0
        %1458 = vmatpush1.bf16.msra.mxu0 0
        %1459 = vmatprep.subr.bf16.mxu0 0
        %1460 = vmatpush1.bf16.msra.mxu0 0
        %1461 = vmatprep.subr.bf16.mxu0 0
        %1462 = vmatpush1.bf16.msra.mxu0 0
        %1463 = vmatprep.subr.bf16.mxu0 0
        %1464 = vmatpush1.bf16.msra.mxu0 0
        %1465 = vmatprep.subr.bf16.mxu0 0
        %1466 = vmatpush1.bf16.msra.mxu0 0
        %1467 = vmatprep.subr.bf16.mxu0 0
        %1468 = vmatpush1.bf16.msra.mxu0 0
        %1469 = vmatprep.subr.bf16.mxu0 0
        %1470 = vmatpush1.bf16.msra.mxu0 0
        %1471 = vmatprep.subr.bf16.mxu0 0
        %1472 = vmatpush1.bf16.msra.mxu0 0
        %1473 = vmatprep.subr.bf16.mxu0 0
        %1474 = vmatpush1.bf16.msra.mxu0 0
        %1475 = vmatprep.subr.bf16.mxu0 0
        %1476 = vmatpush1.bf16.msra.mxu0 0
        %1477 = vmatprep.subr.bf16.mxu0 0
        %1478 = vmatpush1.bf16.msra.mxu0 0
        %1479 = vmatprep.subr.bf16.mxu0 0
        %1480 = vmatpush1.bf16.msra.mxu0 0
        %1481 = vmatprep.subr.bf16.mxu0 0
        %1482 = vmatpush1.bf16.msra.mxu0 0
        %1483 = vmatprep.mubr.bf16.mxu0 0
        %1484 = vmatmul.mubr.bf16.gmra.mrb[0].mxu0 %v1449
        %v1485 = vpop.f32.mrb[0].mxu0
        %v1486 = vadd.f32 0.0, %v1485
        %v1487 = vpop.f32.mrb[0].mxu0
        %v1488 = vpop.f32.mrb[0].mxu0
        %v1489 = vpop.f32.mrb[0].mxu0
        %1490 = vdwg.mxu0
        %v1491 = vpack.c.bf16 %v1486, %v1486
        %s1492 = scalar_lea.vmem %s8, 28
        %v1493 = vld [vmem:[%s1492] sm:$0xf]
        %v1494 = vld [vmem:[%s1492 + $0x4] sm:$0xf]
        %v1495 = vld [vmem:[%s1492 + $0x8] sm:$0xf]
        %v1496 = vld [vmem:[%s1492 + $0xc] sm:$0xf]
        %v1497 = vld [vmem:[%s1492 + $0x10] sm:$0xf]
        %v1498 = vld [vmem:[%s1492 + $0x14] sm:$0xf]
        %v1499 = vld [vmem:[%s1492 + $0x18] sm:$0xf]
        %v1507 = vunpack.c.l.b16 %v1493
        %v1508 = vunpack.c.l.b16 %v1494
        %v1509 = vunpack.c.l.b16 %v1495
        %v1510 = vunpack.c.l.b16 %v1496
        %v1511 = vunpack.c.l.b16 %v1497
        %v1512 = vunpack.c.l.b16 %v1498
        %v1513 = vunpack.c.l.b16 %v1499
        %v1514 = vpack.c.b16 %v1508, %v1507
        %v1515 = vpack.c.b16 %v1510, %v1509
        %v1516 = vpack.c.b16 %v1512, %v1511
        %v1517 = vpack.c.b16 %v1513, %v1513
        %v1522 = vsel %vm1138, %v1491, 0
        %v1525 = vsel %vm1142, %v1517, 0
        %1527 = vmatprep.subr.bf16.mxu0 0
        %1528 = vmatpush1.bf16.msra.mxu0 %v1514
        %1529 = vmatprep.subr.bf16.mxu0 0
        %1530 = vmatpush1.bf16.msra.mxu0 %v1515
        %1531 = vmatprep.subr.bf16.mxu0 0
        %1532 = vmatpush1.bf16.msra.mxu0 %v1516
        %1533 = vmatprep.subr.bf16.mxu0 0
        %1534 = vmatpush1.bf16.msra.mxu0 %v1525
        %1535 = vmatprep.subr.bf16.mxu0 0
        %1536 = vmatpush1.bf16.msra.mxu0 0
        %1537 = vmatprep.subr.bf16.mxu0 0
        %1538 = vmatpush1.bf16.msra.mxu0 0
        %1539 = vmatprep.subr.bf16.mxu0 0
        %1540 = vmatpush1.bf16.msra.mxu0 0
        %1541 = vmatprep.subr.bf16.mxu0 0
        %1542 = vmatpush1.bf16.msra.mxu0 0
        %1543 = vmatprep.subr.bf16.mxu0 0
        %1544 = vmatpush1.bf16.msra.mxu0 0
        %1545 = vmatprep.subr.bf16.mxu0 0
        %1546 = vmatpush1.bf16.msra.mxu0 0
        %1547 = vmatprep.subr.bf16.mxu0 0
        %1548 = vmatpush1.bf16.msra.mxu0 0
        %1549 = vmatprep.subr.bf16.mxu0 0
        %1550 = vmatpush1.bf16.msra.mxu0 0
        %1551 = vmatprep.subr.bf16.mxu0 0
        %1552 = vmatpush1.bf16.msra.mxu0 0
        %1553 = vmatprep.subr.bf16.mxu0 0
        %1554 = vmatpush1.bf16.msra.mxu0 0
        %1555 = vmatprep.subr.bf16.mxu0 0
        %1556 = vmatpush1.bf16.msra.mxu0 0
        %1557 = vmatprep.subr.bf16.mxu0 0
        %1558 = vmatpush1.bf16.msra.mxu0 0
        %1559 = vmatprep.mubr.bf16.mxu0 0
        %1560 = vmatmul.mubr.bf16.gmra.mrb[0].mxu0 %v1522
        %v1561 = vpop.f32.mrb[0].mxu0
        %v1562 = vadd.f32 0.0, %v1561
        %v1563 = vpop.f32.mrb[0].mxu0
        %v1564 = vpop.f32.mrb[0].mxu0
        %v1565 = vpop.f32.mrb[0].mxu0
        %1566 = vdwg.mxu0
        %v1574 = vunpack.c.l.b16 %v1439
        %v1575 = vunpack.c.l.b16 %v1440
        %v1576 = vunpack.c.l.b16 %v1441
        %v1577 = vunpack.c.l.b16 %v1442
        %v1578 = vunpack.c.l.b16 %v1443
        %v1579 = vunpack.c.l.b16 %v1444
        %v1580 = vunpack.c.l.b16 %v1445
        %v1581 = vpack.c.b16 %v1575, %v1574
        %v1582 = vpack.c.b16 %v1577, %v1576
        %v1583 = vpack.c.b16 %v1579, %v1578
        %v1584 = vpack.c.b16 %v1580, %v1580
        %v1589 = vsel %vm1138, %v1438, 0
        %v1592 = vsel %vm1142, %v1584, 0
        %1594 = vmatprep.subr.bf16.mxu0 0
        %1595 = vmatpush1.bf16.msra.mxu0 %v1581
        %1596 = vmatprep.subr.bf16.mxu0 0
        %1597 = vmatpush1.bf16.msra.mxu0 %v1582
        %1598 = vmatprep.subr.bf16.mxu0 0
        %1599 = vmatpush1.bf16.msra.mxu0 %v1583
        %1600 = vmatprep.subr.bf16.mxu0 0
        %1601 = vmatpush1.bf16.msra.mxu0 %v1592
        %1602 = vmatprep.subr.bf16.mxu0 0
        %1603 = vmatpush1.bf16.msra.mxu0 0
        %1604 = vmatprep.subr.bf16.mxu0 0
        %1605 = vmatpush1.bf16.msra.mxu0 0
        %1606 = vmatprep.subr.bf16.mxu0 0
        %1607 = vmatpush1.bf16.msra.mxu0 0
        %1608 = vmatprep.subr.bf16.mxu0 0
        %1609 = vmatpush1.bf16.msra.mxu0 0
        %1610 = vmatprep.subr.bf16.mxu0 0
        %1611 = vmatpush1.bf16.msra.mxu0 0
        %1612 = vmatprep.subr.bf16.mxu0 0
        %1613 = vmatpush1.bf16.msra.mxu0 0
        %1614 = vmatprep.subr.bf16.mxu0 0
        %1615 = vmatpush1.bf16.msra.mxu0 0
        %1616 = vmatprep.subr.bf16.mxu0 0
        %1617 = vmatpush1.bf16.msra.mxu0 0
        %1618 = vmatprep.subr.bf16.mxu0 0
        %1619 = vmatpush1.bf16.msra.mxu0 0
        %1620 = vmatprep.subr.bf16.mxu0 0
        %1621 = vmatpush1.bf16.msra.mxu0 0
        %1622 = vmatprep.subr.bf16.mxu0 0
        %1623 = vmatpush1.bf16.msra.mxu0 0
        %1624 = vmatprep.subr.bf16.mxu0 0
        %1625 = vmatpush1.bf16.msra.mxu0 0
        %1626 = vmatprep.mubr.bf16.mxu0 0
        %1627 = vmatmul.mubr.bf16.gmra.mrb[0].mxu0 %v1589
        %v1628 = vpop.f32.mrb[0].mxu0
        %v1629 = vadd.f32 %v1562, %v1628
        %v1630 = vpop.f32.mrb[0].mxu0
        %v1631 = vpop.f32.mrb[0].mxu0
        %v1632 = vpop.f32.mrb[0].mxu0
        %1633 = vdwg.mxu0
        %s1634 = scalar_lea.vmem %s7, 4
        %v1635 = vld [vmem:[%s1634] sm:$0x3]
        %v1637 = vsel %vm1388, %v1635, 0
        %1639 = vmatprep.subr.bf16.mxu0 0
        %1640 = vmatpush1.bf16.msra.mxu0 %v1396
        %1641 = vmatprep.subr.bf16.mxu0 0
        %1642 = vmatpush1.bf16.msra.mxu0 0
        %1643 = vmatprep.subr.bf16.mxu0 0
        %1644 = vmatpush1.bf16.msra.mxu0 0
        %1645 = vmatprep.subr.bf16.mxu0 0
        %1646 = vmatpush1.bf16.msra.mxu0 0
        %1647 = vmatprep.subr.bf16.mxu0 0
        %1648 = vmatpush1.bf16.msra.mxu0 0
        %1649 = vmatprep.subr.bf16.mxu0 0
        %1650 = vmatpush1.bf16.msra.mxu0 0
        %1651 = vmatprep.subr.bf16.mxu0 0
        %1652 = vmatpush1.bf16.msra.mxu0 0
        %1653 = vmatprep.subr.bf16.mxu0 0
        %1654 = vmatpush1.bf16.msra.mxu0 0
        %1655 = vmatprep.subr.bf16.mxu0 0
        %1656 = vmatpush1.bf16.msra.mxu0 0
        %1657 = vmatprep.subr.bf16.mxu0 0
        %1658 = vmatpush1.bf16.msra.mxu0 0
        %1659 = vmatprep.subr.bf16.mxu0 0
        %1660 = vmatpush1.bf16.msra.mxu0 0
        %1661 = vmatprep.subr.bf16.mxu0 0
        %1662 = vmatpush1.bf16.msra.mxu0 0
        %1663 = vmatprep.subr.bf16.mxu0 0
        %1664 = vmatpush1.bf16.msra.mxu0 0
        %1665 = vmatprep.subr.bf16.mxu0 0
        %1666 = vmatpush1.bf16.msra.mxu0 0
        %1667 = vmatprep.subr.bf16.mxu0 0
        %1668 = vmatpush1.bf16.msra.mxu0 0
        %1669 = vmatprep.subr.bf16.mxu0 0
        %1670 = vmatpush1.bf16.msra.mxu0 0
        %1671 = vmatprep.mubr.bf16.mxu0 0
        %1672 = vmatmul.mubr.bf16.gmra.mrb[0].mxu0 %v1637
        %v1673 = vpop.f32.mrb[0].mxu0
        %v1674 = vadd.f32 0.0, %v1673
        %v1675 = vpop.f32.mrb[0].mxu0
        %v1676 = vpop.f32.mrb[0].mxu0
        %v1677 = vpop.f32.mrb[0].mxu0
        %1678 = vdwg.mxu0
        %v1679 = vpack.c.bf16 %v1674, %v1674
        %s1680 = scalar_lea.vmem %s8, 56
        %v1681 = vld [vmem:[%s1680] sm:$0xf]
        %v1682 = vld [vmem:[%s1680 + $0x4] sm:$0xf]
        %v1683 = vld [vmem:[%s1680 + $0x8] sm:$0xf]
        %v1684 = vld [vmem:[%s1680 + $0xc] sm:$0xf]
        %v1685 = vld [vmem:[%s1680 + $0x10] sm:$0xf]
        %v1686 = vld [vmem:[%s1680 + $0x14] sm:$0xf]
        %v1687 = vld [vmem:[%s1680 + $0x18] sm:$0xf]
        %v1695 = vunpack.c.l.b16 %v1681
        %v1696 = vunpack.c.l.b16 %v1682
        %v1697 = vunpack.c.l.b16 %v1683
        %v1698 = vunpack.c.l.b16 %v1684
        %v1699 = vunpack.c.l.b16 %v1685
        %v1700 = vunpack.c.l.b16 %v1686
        %v1701 = vunpack.c.l.b16 %v1687
        %v1702 = vpack.c.b16 %v1696, %v1695
        %v1703 = vpack.c.b16 %v1698, %v1697
        %v1704 = vpack.c.b16 %v1700, %v1699
        %v1705 = vpack.c.b16 %v1701, %v1701
        %v1710 = vsel %vm1138, %v1679, 0
        %v1713 = vsel %vm1142, %v1705, 0
        %1715 = vmatprep.subr.bf16.mxu0 0
        %1716 = vmatpush1.bf16.msra.mxu0 %v1702
        %1717 = vmatprep.subr.bf16.mxu0 0
        %1718 = vmatpush1.bf16.msra.mxu0 %v1703
        %1719 = vmatprep.subr.bf16.mxu0 0
        %1720 = vmatpush1.bf16.msra.mxu0 %v1704
        %1721 = vmatprep.subr.bf16.mxu0 0
        %1722 = vmatpush1.bf16.msra.mxu0 %v1713
        %1723 = vmatprep.subr.bf16.mxu0 0
        %1724 = vmatpush1.bf16.msra.mxu0 0
        %1725 = vmatprep.subr.bf16.mxu0 0
        %1726 = vmatpush1.bf16.msra.mxu0 0
        %1727 = vmatprep.subr.bf16.mxu0 0
        %1728 = vmatpush1.bf16.msra.mxu0 0
        %1729 = vmatprep.subr.bf16.mxu0 0
        %1730 = vmatpush1.bf16.msra.mxu0 0
        %1731 = vmatprep.subr.bf16.mxu0 0
        %1732 = vmatpush1.bf16.msra.mxu0 0
        %1733 = vmatprep.subr.bf16.mxu0 0
        %1734 = vmatpush1.bf16.msra.mxu0 0
        %1735 = vmatprep.subr.bf16.mxu0 0
        %1736 = vmatpush1.bf16.msra.mxu0 0
        %1737 = vmatprep.subr.bf16.mxu0 0
        %1738 = vmatpush1.bf16.msra.mxu0 0
        %1739 = vmatprep.subr.bf16.mxu0 0
        %1740 = vmatpush1.bf16.msra.mxu0 0
        %1741 = vmatprep.subr.bf16.mxu0 0
        %1742 = vmatpush1.bf16.msra.mxu0 0
        %1743 = vmatprep.subr.bf16.mxu0 0
        %1744 = vmatpush1.bf16.msra.mxu0 0
        %1745 = vmatprep.subr.bf16.mxu0 0
        %1746 = vmatpush1.bf16.msra.mxu0 0
        %1747 = vmatprep.mubr.bf16.mxu0 0
        %1748 = vmatmul.mubr.bf16.gmra.mrb[0].mxu0 %v1710
        %v1749 = vpop.f32.mrb[0].mxu0
        %v1750 = vadd.f32 0.0, %v1749
        %v1751 = vpop.f32.mrb[0].mxu0
        %v1752 = vpop.f32.mrb[0].mxu0
        %v1753 = vpop.f32.mrb[0].mxu0
        %1754 = vdwg.mxu0
        %v1755 = vadd.f32 %v1629, %v1750
        %v1756 = vld [vmem:[%s9] sm:$0x1]
        %v1758 = vlaneseq
        %v1759 = vshrl.u32 %v1758, 7
        %v1760 = vsub.s32 0, %v1759
        %v1761 = vrot.slane %v1756, %v1760
        %v1763 = vadd.f32 %v1755, %v1761
        %v1764 = vpack.c.bf16 %v1763, %v1763
        %v1765 = vld [vmem:[%s10] sm:$0x1]
        %vm1766 = vcmask 31744
        %v1768 = vsel %vm1766, %v1765, 0
        %vm1770 = vcmask 1041408
        %v1772 = vsel %vm1770, %v1764, 0
        %1774 = vmatprep.subr.bf16.mxu0 0
        %1775 = vmatpush1.bf16.msra.mxu0 %v1772
        %1776 = vmatprep.subr.bf16.mxu0 0
        %1777 = vmatpush1.bf16.msra.mxu0 0
        %1778 = vmatprep.subr.bf16.mxu0 0
        %1779 = vmatpush1.bf16.msra.mxu0 0
        %1780 = vmatprep.subr.bf16.mxu0 0
        %1781 = vmatpush1.bf16.msra.mxu0 0
        %1782 = vmatprep.subr.bf16.mxu0 0
        %1783 = vmatpush1.bf16.msra.mxu0 0
        %1784 = vmatprep.subr.bf16.mxu0 0
        %1785 = vmatpush1.bf16.msra.mxu0 0
        %1786 = vmatprep.subr.bf16.mxu0 0
        %1787 = vmatpush1.bf16.msra.mxu0 0
        %1788 = vmatprep.subr.bf16.mxu0 0
        %1789 = vmatpush1.bf16.msra.mxu0 0
        %1790 = vmatprep.subr.bf16.mxu0 0
        %1791 = vmatpush1.bf16.msra.mxu0 0
        %1792 = vmatprep.subr.bf16.mxu0 0
        %1793 = vmatpush1.bf16.msra.mxu0 0
        %1794 = vmatprep.subr.bf16.mxu0 0
        %1795 = vmatpush1.bf16.msra.mxu0 0
        %1796 = vmatprep.subr.bf16.mxu0 0
        %1797 = vmatpush1.bf16.msra.mxu0 0
        %1798 = vmatprep.subr.bf16.mxu0 0
        %1799 = vmatpush1.bf16.msra.mxu0 0
        %1800 = vmatprep.subr.bf16.mxu0 0
        %1801 = vmatpush1.bf16.msra.mxu0 0
        %1802 = vmatprep.subr.bf16.mxu0 0
        %1803 = vmatpush1.bf16.msra.mxu0 0
        %1804 = vmatprep.subr.bf16.mxu0 0
        %1805 = vmatpush1.bf16.msra.mxu0 0
        %1806 = vmatprep.mubr.bf16.mxu0 0
        %1807 = vmatmul.mubr.bf16.gmra.mrb[0].mxu0 %v1768
        %v1808 = vpop.f32.mrb[0].mxu0
        %v1809 = vadd.f32 0.0, %v1808
        %v1810 = vpop.f32.mrb[0].mxu0
        %v1811 = vpop.f32.mrb[0].mxu0
        %v1812 = vpop.f32.mrb[0].mxu0
        %1813 = vdwg.mxu0
        %v1814 = vpack.c.bf16 %v1809, %v1809
        %v1815 = vld [vmem:[%s11] sm:$0xf]
        %v1816 = vld [vmem:[%s11 + $0x4] sm:$0xf]
        %v1817 = vld [vmem:[%s11 + $0x8] sm:$0xf]
        %v1818 = vld [vmem:[%s11 + $0xc] sm:$0xf]
        %v1819 = vld [vmem:[%s11 + $0x10] sm:$0xf]
        %v1820 = vld [vmem:[%s11 + $0x14] sm:$0xf]
        %v1821 = vld [vmem:[%s11 + $0x18] sm:$0xf]
        %v1822 = vld [vmem:[%s11 + $0x1c] sm:$0xf]
        %s1823 = scalar_lea.vmem %s10, 1
        %v1824 = vld [vmem:[%s1823] sm:$0x1]
        %v1826 = vsel %vm1766, %v1824, 0
        %1828 = vmatprep.subr.bf16.mxu0 0
        %1829 = vmatpush1.bf16.msra.mxu0 %v1772
        %1830 = vmatprep.subr.bf16.mxu0 0
        %1831 = vmatpush1.bf16.msra.mxu0 0
        %1832 = vmatprep.subr.bf16.mxu0 0
        %1833 = vmatpush1.bf16.msra.mxu0 0
        %1834 = vmatprep.subr.bf16.mxu0 0
        %1835 = vmatpush1.bf16.msra.mxu0 0
        %1836 = vmatprep.subr.bf16.mxu0 0
        %1837 = vmatpush1.bf16.msra.mxu0 0
        %1838 = vmatprep.subr.bf16.mxu0 0
        %1839 = vmatpush1.bf16.msra.mxu0 0
        %1840 = vmatprep.subr.bf16.mxu0 0
        %1841 = vmatpush1.bf16.msra.mxu0 0
        %1842 = vmatprep.subr.bf16.mxu0 0
        %1843 = vmatpush1.bf16.msra.mxu0 0
        %1844 = vmatprep.subr.bf16.mxu0 0
        %1845 = vmatpush1.bf16.msra.mxu0 0
        %1846 = vmatprep.subr.bf16.mxu0 0
        %1847 = vmatpush1.bf16.msra.mxu0 0
        %1848 = vmatprep.subr.bf16.mxu0 0
        %1849 = vmatpush1.bf16.msra.mxu0 0
        %1850 = vmatprep.subr.bf16.mxu0 0
        %1851 = vmatpush1.bf16.msra.mxu0 0
        %1852 = vmatprep.subr.bf16.mxu0 0
        %1853 = vmatpush1.bf16.msra.mxu0 0
        %1854 = vmatprep.subr.bf16.mxu0 0
        %1855 = vmatpush1.bf16.msra.mxu0 0
        %1856 = vmatprep.subr.bf16.mxu0 0
        %1857 = vmatpush1.bf16.msra.mxu0 0
        %1858 = vmatprep.subr.bf16.mxu0 0
        %1859 = vmatpush1.bf16.msra.mxu0 0
        %1860 = vmatprep.mubr.bf16.mxu0 0
        %1861 = vmatmul.mubr.bf16.gmra.mrb[0].mxu0 %v1826
        %v1862 = vpop.f32.mrb[0].mxu0
        %v1863 = vadd.f32 0.0, %v1862
        %v1864 = vpop.f32.mrb[0].mxu0
        %v1865 = vpop.f32.mrb[0].mxu0
        %v1866 = vpop.f32.mrb[0].mxu0
        %1867 = vdwg.mxu0
        %v1868 = vpack.c.bf16 %v1863, %v1863
        %s1869 = scalar_lea.vmem %s11, 32
        %v1870 = vld [vmem:[%s1869] sm:$0xf]
        %v1871 = vld [vmem:[%s1869 + $0x4] sm:$0xf]
        %v1872 = vld [vmem:[%s1869 + $0x8] sm:$0xf]
        %v1873 = vld [vmem:[%s1869 + $0xc] sm:$0xf]
        %v1874 = vld [vmem:[%s1869 + $0x10] sm:$0xf]
        %v1875 = vld [vmem:[%s1869 + $0x14] sm:$0xf]
        %v1876 = vld [vmem:[%s1869 + $0x18] sm:$0xf]
        %v1877 = vld [vmem:[%s1869 + $0x1c] sm:$0xf]
        %v1886 = vunpack.c.l.b16 %v1870
        %v1887 = vunpack.c.l.b16 %v1871
        %v1888 = vunpack.c.l.b16 %v1872
        %v1889 = vunpack.c.l.b16 %v1873
        %v1890 = vunpack.c.l.b16 %v1874
        %v1891 = vunpack.c.l.b16 %v1875
        %v1892 = vunpack.c.l.b16 %v1876
        %v1893 = vunpack.c.l.b16 %v1877
        %v1894 = vpack.c.b16 %v1887, %v1886
        %v1895 = vpack.c.b16 %v1889, %v1888
        %v1896 = vpack.c.b16 %v1891, %v1890
        %v1897 = vpack.c.b16 %v1893, %v1892
        %vm1902 = vcmask 523264
        %v1904 = vsel %vm1902, %v1868, 0
        %1906 = vmatprep.subr.bf16.mxu0 0
        %1907 = vmatpush1.bf16.msra.mxu0 %v1894
        %1908 = vmatprep.subr.bf16.mxu0 0
        %1909 = vmatpush1.bf16.msra.mxu0 %v1895
        %1910 = vmatprep.subr.bf16.mxu0 0
        %1911 = vmatpush1.bf16.msra.mxu0 %v1896
        %1912 = vmatprep.subr.bf16.mxu0 0
        %1913 = vmatpush1.bf16.msra.mxu0 %v1897
        %1914 = vmatprep.subr.bf16.mxu0 0
        %1915 = vmatpush1.bf16.msra.mxu0 0
        %1916 = vmatprep.subr.bf16.mxu0 0
        %1917 = vmatpush1.bf16.msra.mxu0 0
        %1918 = vmatprep.subr.bf16.mxu0 0
        %1919 = vmatpush1.bf16.msra.mxu0 0
        %1920 = vmatprep.subr.bf16.mxu0 0
        %1921 = vmatpush1.bf16.msra.mxu0 0
        %1922 = vmatprep.subr.bf16.mxu0 0
        %1923 = vmatpush1.bf16.msra.mxu0 0
        %1924 = vmatprep.subr.bf16.mxu0 0
        %1925 = vmatpush1.bf16.msra.mxu0 0
        %1926 = vmatprep.subr.bf16.mxu0 0
        %1927 = vmatpush1.bf16.msra.mxu0 0
        %1928 = vmatprep.subr.bf16.mxu0 0
        %1929 = vmatpush1.bf16.msra.mxu0 0
        %1930 = vmatprep.subr.bf16.mxu0 0
        %1931 = vmatpush1.bf16.msra.mxu0 0
        %1932 = vmatprep.subr.bf16.mxu0 0
        %1933 = vmatpush1.bf16.msra.mxu0 0
        %1934 = vmatprep.subr.bf16.mxu0 0
        %1935 = vmatpush1.bf16.msra.mxu0 0
        %1936 = vmatprep.subr.bf16.mxu0 0
        %1937 = vmatpush1.bf16.msra.mxu0 0
        %1938 = vmatprep.mubr.bf16.mxu0 0
        %1939 = vmatmul.mubr.bf16.gmra.mrb[0].mxu0 %v1904
        %v1940 = vpop.f32.mrb[0].mxu0
        %v1941 = vadd.f32 0.0, %v1940
        %v1942 = vpop.f32.mrb[0].mxu0
        %v1943 = vpop.f32.mrb[0].mxu0
        %v1944 = vpop.f32.mrb[0].mxu0
        %1945 = vdwg.mxu0
        %v1954 = vunpack.c.l.b16 %v1815
        %v1955 = vunpack.c.l.b16 %v1816
        %v1956 = vunpack.c.l.b16 %v1817
        %v1957 = vunpack.c.l.b16 %v1818
        %v1958 = vunpack.c.l.b16 %v1819
        %v1959 = vunpack.c.l.b16 %v1820
        %v1960 = vunpack.c.l.b16 %v1821
        %v1961 = vunpack.c.l.b16 %v1822
        %v1962 = vpack.c.b16 %v1955, %v1954
        %v1963 = vpack.c.b16 %v1957, %v1956
        %v1964 = vpack.c.b16 %v1959, %v1958
        %v1965 = vpack.c.b16 %v1961, %v1960
        %v1971 = vsel %vm1902, %v1814, 0
        %1973 = vmatprep.subr.bf16.mxu0 0
        %1974 = vmatpush1.bf16.msra.mxu0 %v1962
        %1975 = vmatprep.subr.bf16.mxu0 0
        %1976 = vmatpush1.bf16.msra.mxu0 %v1963
        %1977 = vmatprep.subr.bf16.mxu0 0
        %1978 = vmatpush1.bf16.msra.mxu0 %v1964
        %1979 = vmatprep.subr.bf16.mxu0 0
        %1980 = vmatpush1.bf16.msra.mxu0 %v1965
        %1981 = vmatprep.subr.bf16.mxu0 0
        %1982 = vmatpush1.bf16.msra.mxu0 0
        %1983 = vmatprep.subr.bf16.mxu0 0
        %1984 = vmatpush1.bf16.msra.mxu0 0
        %1985 = vmatprep.subr.bf16.mxu0 0
        %1986 = vmatpush1.bf16.msra.mxu0 0
        %1987 = vmatprep.subr.bf16.mxu0 0
        %1988 = vmatpush1.bf16.msra.mxu0 0
        %1989 = vmatprep.subr.bf16.mxu0 0
        %1990 = vmatpush1.bf16.msra.mxu0 0
        %1991 = vmatprep.subr.bf16.mxu0 0
        %1992 = vmatpush1.bf16.msra.mxu0 0
        %1993 = vmatprep.subr.bf16.mxu0 0
        %1994 = vmatpush1.bf16.msra.mxu0 0
        %1995 = vmatprep.subr.bf16.mxu0 0
        %1996 = vmatpush1.bf16.msra.mxu0 0
        %1997 = vmatprep.subr.bf16.mxu0 0
        %1998 = vmatpush1.bf16.msra.mxu0 0
        %1999 = vmatprep.subr.bf16.mxu0 0
        %2000 = vmatpush1.bf16.msra.mxu0 0
        %2001 = vmatprep.subr.bf16.mxu0 0
        %2002 = vmatpush1.bf16.msra.mxu0 0
        %2003 = vmatprep.subr.bf16.mxu0 0
        %2004 = vmatpush1.bf16.msra.mxu0 0
        %2005 = vmatprep.mubr.bf16.mxu0 0
        %2006 = vmatmul.mubr.bf16.gmra.mrb[0].mxu0 %v1971
        %v2007 = vpop.f32.mrb[0].mxu0
        %v2008 = vadd.f32 %v1941, %v2007
        %v2009 = vpop.f32.mrb[0].mxu0
        %v2010 = vpop.f32.mrb[0].mxu0
        %v2011 = vpop.f32.mrb[0].mxu0
        %2012 = vdwg.mxu0
        %s2013 = scalar_lea.vmem %s10, 2
        %v2014 = vld [vmem:[%s2013] sm:$0x1]
        %v2016 = vsel %vm1766, %v2014, 0
        %2018 = vmatprep.subr.bf16.mxu0 0
        %2019 = vmatpush1.bf16.msra.mxu0 %v1772
        %2020 = vmatprep.subr.bf16.mxu0 0
        %2021 = vmatpush1.bf16.msra.mxu0 0
        %2022 = vmatprep.subr.bf16.mxu0 0
        %2023 = vmatpush1.bf16.msra.mxu0 0
        %2024 = vmatprep.subr.bf16.mxu0 0
        %2025 = vmatpush1.bf16.msra.mxu0 0
        %2026 = vmatprep.subr.bf16.mxu0 0
        %2027 = vmatpush1.bf16.msra.mxu0 0
        %2028 = vmatprep.subr.bf16.mxu0 0
        %2029 = vmatpush1.bf16.msra.mxu0 0
        %2030 = vmatprep.subr.bf16.mxu0 0
        %2031 = vmatpush1.bf16.msra.mxu0 0
        %2032 = vmatprep.subr.bf16.mxu0 0
        %2033 = vmatpush1.bf16.msra.mxu0 0
        %2034 = vmatprep.subr.bf16.mxu0 0
        %2035 = vmatpush1.bf16.msra.mxu0 0
        %2036 = vmatprep.subr.bf16.mxu0 0
        %2037 = vmatpush1.bf16.msra.mxu0 0
        %2038 = vmatprep.subr.bf16.mxu0 0
        %2039 = vmatpush1.bf16.msra.mxu0 0
        %2040 = vmatprep.subr.bf16.mxu0 0
        %2041 = vmatpush1.bf16.msra.mxu0 0
        %2042 = vmatprep.subr.bf16.mxu0 0
        %2043 = vmatpush1.bf16.msra.mxu0 0
        %2044 = vmatprep.subr.bf16.mxu0 0
        %2045 = vmatpush1.bf16.msra.mxu0 0
        %2046 = vmatprep.subr.bf16.mxu0 0
        %2047 = vmatpush1.bf16.msra.mxu0 0
        %2048 = vmatprep.subr.bf16.mxu0 0
        %2049 = vmatpush1.bf16.msra.mxu0 0
        %2050 = vmatprep.mubr.bf16.mxu0 0
        %2051 = vmatmul.mubr.bf16.gmra.mrb[0].mxu0 %v2016
        %v2052 = vpop.f32.mrb[0].mxu0
        %v2053 = vadd.f32 0.0, %v2052
        %v2054 = vpop.f32.mrb[0].mxu0
        %v2055 = vpop.f32.mrb[0].mxu0
        %v2056 = vpop.f32.mrb[0].mxu0
        %2057 = vdwg.mxu0
        %v2058 = vpack.c.bf16 %v2053, %v2053
        %s2059 = scalar_lea.vmem %s11, 64
        %v2060 = vld [vmem:[%s2059] sm:$0xf]
        %v2061 = vld [vmem:[%s2059 + $0x4] sm:$0xf]
        %v2062 = vld [vmem:[%s2059 + $0x8] sm:$0xf]
        %v2063 = vld [vmem:[%s2059 + $0xc] sm:$0xf]
        %v2064 = vld [vmem:[%s2059 + $0x10] sm:$0xf]
        %v2065 = vld [vmem:[%s2059 + $0x14] sm:$0xf]
        %v2066 = vld [vmem:[%s2059 + $0x18] sm:$0xf]
        %v2067 = vld [vmem:[%s2059 + $0x1c] sm:$0xf]
        %v2076 = vunpack.c.l.b16 %v2060
        %v2077 = vunpack.c.l.b16 %v2061
        %v2078 = vunpack.c.l.b16 %v2062
        %v2079 = vunpack.c.l.b16 %v2063
        %v2080 = vunpack.c.l.b16 %v2064
        %v2081 = vunpack.c.l.b16 %v2065
        %v2082 = vunpack.c.l.b16 %v2066
        %v2083 = vunpack.c.l.b16 %v2067
        %v2084 = vpack.c.b16 %v2077, %v2076
        %v2085 = vpack.c.b16 %v2079, %v2078
        %v2086 = vpack.c.b16 %v2081, %v2080
        %v2087 = vpack.c.b16 %v2083, %v2082
        %v2093 = vsel %vm1902, %v2058, 0
        %2095 = vmatprep.subr.bf16.mxu0 0
        %2096 = vmatpush1.bf16.msra.mxu0 %v2084
        %2097 = vmatprep.subr.bf16.mxu0 0
        %2098 = vmatpush1.bf16.msra.mxu0 %v2085
        %2099 = vmatprep.subr.bf16.mxu0 0
        %2100 = vmatpush1.bf16.msra.mxu0 %v2086
        %2101 = vmatprep.subr.bf16.mxu0 0
        %2102 = vmatpush1.bf16.msra.mxu0 %v2087
        %2103 = vmatprep.subr.bf16.mxu0 0
        %2104 = vmatpush1.bf16.msra.mxu0 0
        %2105 = vmatprep.subr.bf16.mxu0 0
        %2106 = vmatpush1.bf16.msra.mxu0 0
        %2107 = vmatprep.subr.bf16.mxu0 0
        %2108 = vmatpush1.bf16.msra.mxu0 0
        %2109 = vmatprep.subr.bf16.mxu0 0
        %2110 = vmatpush1.bf16.msra.mxu0 0
        %2111 = vmatprep.subr.bf16.mxu0 0
        %2112 = vmatpush1.bf16.msra.mxu0 0
        %2113 = vmatprep.subr.bf16.mxu0 0
        %2114 = vmatpush1.bf16.msra.mxu0 0
        %2115 = vmatprep.subr.bf16.mxu0 0
        %2116 = vmatpush1.bf16.msra.mxu0 0
        %2117 = vmatprep.subr.bf16.mxu0 0
        %2118 = vmatpush1.bf16.msra.mxu0 0
        %2119 = vmatprep.subr.bf16.mxu0 0
        %2120 = vmatpush1.bf16.msra.mxu0 0
        %2121 = vmatprep.subr.bf16.mxu0 0
        %2122 = vmatpush1.bf16.msra.mxu0 0
        %2123 = vmatprep.subr.bf16.mxu0 0
        %2124 = vmatpush1.bf16.msra.mxu0 0
        %2125 = vmatprep.subr.bf16.mxu0 0
        %2126 = vmatpush1.bf16.msra.mxu0 0
        %2127 = vmatprep.mubr.bf16.mxu0 0
        %2128 = vmatmul.mubr.bf16.gmra.mrb[0].mxu0 %v2093
        %v2129 = vpop.f32.mrb[0].mxu0
        %v2130 = vadd.f32 0.0, %v2129
        %v2131 = vpop.f32.mrb[0].mxu0
        %v2132 = vpop.f32.mrb[0].mxu0
        %v2133 = vpop.f32.mrb[0].mxu0
        %2134 = vdwg.mxu0
        %v2135 = vadd.f32 %v2008, %v2130
        %v2136 = vld [vmem:[%s12] sm:$0x1]
        %v2137 = vadd.f32 %v2135, %v2136
        %v2138 = vmax.f32 %v2137, 0.0
        %v2139 = vand.u32 2147483647, %v2137
        %v2140 = vsub.f32 0.0, %v2139
        %v2141 = vmul.f32 %v2140, 1.442695
        %v2142 = vpow.pop %v2141
        %v2143 = vadd.f32 %v2142, 1.0
        %v2144 = vlog2.pop %v2143
        %v2145 = vmul.f32 %v2144, 0.6931472
        %v2146 = vadd.f32 %v2138, %v2145
        %v2147 = vadd.f32 %v2146, 1e-05
        %v2148 = vld [vmem:[%s511] sm:$0x1]
        %v2150 = vlaneseq
        %v2151 = vshrl.u32 %v2150, 7
        %v2152 = vsub.s32 0, %v2151
        %v2153 = vrot.slane %v2148, %v2152
        %2154 = vrot.lane.b32.xlu0 %v2153, 8
        %v2155 = vpop.permute.xlu0 %2154
        %v2157 = vmul.f32 %v2147, %v2155
        %2159 = vrot.lane.b32.xlu0 %v2157, 120
        %v2160 = vpop.permute.xlu0 %2159
        %v2162 = vadd.f32 %v2137, %v2160
        %vm2163 = vcmask 57344
        %2164 = vst.msk [vmem:[%s498] sm:$0x1] %vm2163, %v2162
        %v2165 = vmul.f32 %v2148, -0.5
        %v2166 = vmul.f32 %v2165, %v2148
        %v2167 = vlog2.pop %v2147
        %v2168 = vmul.f32 %v2167, 0.6931472
        %v2171 = vunpack.c.l.s4 1966171168
        %v2172 = vunpack.c.0.s8 %v2171
        %v2173 = vlaneseq
        %v2174 = vshrl.u32 %v2173, 7
        %v2175 = vsub.s32 %v2172, %v2174
        %v2176 = vrot.slane %v2168, %v2175
        %v2178 = vunpack.c.l.s4 1966171168
        %v2179 = vunpack.c.0.s8 %v2178
        %v2180 = vlaneseq
        %v2181 = vshrl.u32 %v2180, 7
        %v2182 = vsub.s32 %v2179, %v2181
        %v2183 = vrot.slane %v2176, %v2182
        %2184 = vrot.lane.b32.xlu0 %v2183, 120
        %v2185 = vpop.permute.xlu0 %2184
        %v2187 = vsub.f32 %v2166, %v2185
        %v2188 = vsub.f32 %v2187, 0.9189385
        %v2189 = vsel %vm2163, %v2188, 0.0
        %2190 = vadd.xlane.f32.xlu0 %v2189
        %v2191 = vpop.xlane.xlu0 %2190
        %vm2192 = vcmask 0
        %2193 = vst.msk [vmem:[%s514] sm:$0x1] %vm2192, %v2191
        %s2194 = sand.u32 %s342, 1
        %s2195 = scalar_lea.sflag [#allocation3], %s2194
        %s2196 = sand.u32 %s342, 1
        %s2197 = scalar_lea.vmem [#allocation2], %s2196
        %p2198 = scmp.lt.s32.totalorder %s30, 1
        %s2199 = scalar_select %p2198, %s30, 1
        %s2200 = scalar_lea.vmem %s15, %s2199
        // Predicated region
        $region77: #{qa_xmym_forward.1} parent=75 // pred_check
          %p2201 = pneg %p352
        $region78: #{qa_xmym_forward.1} parent=75 // pred_check_branch
          %2203 = sbr.rel (%p2201) target = $region80
        $region79: #{qa_xmym_forward.1} parent=75 // pred_region
          %s2205 = ssub.s32 16, 16
          %2206 = vsyncadd %s2195, %s2205
          %s2207 = smul.addr %s30, 16
          %s2208 = scalar_lea.hbm %s14, %s2207
          %s2210 = sshll.u32 %s2197, 4
          %s2211 = int_to_ptr.vmem [resolvable:$true] %s2210
          %2213 = dma.vmem_to_hbm [thread:$0]  %s2211, 16, %s2208, %s2195
        $region80: #{qa_xmym_forward.1} parent=75 // pred_fallthru
          _
        // Predicated region
        $region81: #{qa_xmym_forward.1} parent=75 // pred_check
          %p2214 = pneg %p378
        $region82: #{qa_xmym_forward.1} parent=75 // pred_check_branch
          %2216 = sbr.rel (%p2214) target = $region84
        $region83: #{qa_xmym_forward.1} parent=75 // pred_region
          _
        $region84: #{qa_xmym_forward.1} parent=75 // pred_fallthru
          _
      $region76: #{qa_xmym_forward.1} parent=5 // pred_fallthru
        _
      %p2217 = scmp.le.s32.totalorder 2, %s25
      // Predicated region
      $region85: #{qa_xmym_forward.1} parent=5 // pred_check
        %p2218 = pneg %p2217
      $region86: #{qa_xmym_forward.1} parent=5 // pred_check_branch
        %2220 = sbr.rel (%p2218) target = $region88
      $region87: #{qa_xmym_forward.1} parent=5 // pred_region
        %s2221 = ssub.s32 %s25, 2
        // Predicated region
        $region89: #{qa_xmym_forward.1} parent=87 // pred_check
          %p2222 = pneg %p358
        $region90: #{qa_xmym_forward.1} parent=87 // pred_check_branch
          %2224 = sbr.rel (%p2222) target = $region92
        $region91: #{qa_xmym_forward.1} parent=87 // pred_region
          %s2225 = sand.u32 %s343, 1
          %s2226 = scalar_lea.sflag [#allocation3], %s2225
          %s2227 = sand.u32 %s343, 1
          %s2228 = scalar_lea.vmem [#allocation2], %s2227
          %2229 = dma.done %s2226, 16
        $region92: #{qa_xmym_forward.1} parent=87 // pred_fallthru
          _
        // Predicated region
        $region93: #{qa_xmym_forward.1} parent=87 // pred_check
          %p2230 = pneg %p384
        $region94: #{qa_xmym_forward.1} parent=87 // pred_check_branch
          %2232 = sbr.rel (%p2230) target = $region96
        $region95: #{qa_xmym_forward.1} parent=87 // pred_region
          %p2233 = scmp.lt.s32.totalorder %s31, 1
          %s2234 = scalar_select %p2233, %s31, 1
          %s2235 = scalar_lea.vmem %s15, %s2234
        $region96: #{qa_xmym_forward.1} parent=87 // pred_fallthru
          _
      $region88: #{qa_xmym_forward.1} parent=5 // pred_fallthru
        _
    $region6: #{qa_xmym_forward.1} parent=1 // loop_footer
      %s29 = sadd.s32 1, %s25
    $region7: #{qa_xmym_forward.1} parent=1 // loop_footer_branch
      %24 = sbr.rel target = $region3
    $region8: #{qa_xmym_forward.1} parent=1 // loop_exit
      _
    %2236 = vsyncpa [#allocation3], 1
    %s2237 = scalar_lea.sflag [#allocation3], 1
    %2238 = vsyncpa %s2237, 1

</llo_original>
